<compile_context>
chip_gen: v5e
topology: v5e:2x2
jax: 0.10.0
libtpu: 0.0.40
codegen_flags: <defaults>
</compile_context>

<pallas_src>
import functools
import math

import jax
import jax.numpy as jnp
from jax.experimental import pallas as pl
from jax.experimental.pallas import tpu as pltpu


def _layer_norm(x, gamma, beta, eps):
    """torch.nn.LayerNorm over the last dim (biased variance), f32 statistics."""
    x = x.astype(jnp.float32)
    mu = jnp.mean(x, axis=-1, keepdims=True)
    var = jnp.mean(jnp.square(x - mu), axis=-1, keepdims=True)
    inv = jax.lax.rsqrt(var + eps)
    return (x - mu) * inv * gamma.astype(jnp.float32) + beta.astype(jnp.float32)


def _erf_approx(x):
    # Abramowitz & Stegun 7.1.26, |err| <= 1.5e-7: matches nn.GELU's exact (erf) form
    # to well within f32 noise without relying on an erf primitive lowering.
    a1, a2, a3, a4, a5 = 0.254829592, -0.284496736, 1.421413741, -1.453152027, 1.061405429
    p = 0.3275911
    s = jnp.where(x >= 0.0, 1.0, -1.0)
    ax = jnp.abs(x)
    t = 1.0 / (1.0 + p * ax)
    poly = ((((a5 * t + a4) * t + a3) * t + a2) * t + a1) * t
    return s * (1.0 - poly * jnp.exp(-ax * ax))


def _gelu_erf(x):
    return 0.5 * x * (1.0 + _erf_approx(x * 0.7071067811865476))


def _encoder_block_kernel(
    x_q_ref, x_kv_ref, mask_ref,
    ln1_g_ref, ln1_b_ref,
    wqkv_ref, wo_ref, bo_ref,
    ln2_g_ref, ln2_b_ref,
    w1_ref, b1_ref, w2_ref, b2_ref,
    o_ref,
    *, num_heads, head_dim, scale, eps,
):
    d_model = num_heads * head_dim

    x_q = x_q_ref[0]          # (Tq, D)  q-tile rows of the embedding (residual + query path)
    x_kv = x_kv_ref[0]        # (S,  D)  full sequence (key/value path, resident across q tiles)
    mask0 = mask_ref[0] == 0  # (Tq, S)  True where masked out

    # ---- LayerNorm1 ----
    xn_q = _layer_norm(x_q, ln1_g_ref[...], ln1_b_ref[...], eps)    # (Tq, D) f32
    xn_kv = _layer_norm(x_kv, ln1_g_ref[...], ln1_b_ref[...], eps)  # (S,  D) f32

    # ---- fused Q / KV projections (bias-free, as in the module) ----
    mx_dtype = wqkv_ref.dtype
    q_all = jnp.dot(xn_q.astype(mx_dtype), wqkv_ref[:, 0:d_model],
                    preferred_element_type=jnp.float32)                       # (Tq, D)
    kv_all = jnp.dot(xn_kv.astype(mx_dtype), wqkv_ref[:, d_model:3 * d_model],
                     preferred_element_type=jnp.float32)                      # (S, 2D)
    k_all = kv_all[:, 0:d_model]
    v_all = kv_all[:, d_model:2 * d_model]

    # ---- per-head attention; concat(ctx_h) @ Wo folded into per-head partial matmuls ----
    attn_acc = jnp.zeros((x_q.shape[0], d_model), jnp.float32)
    for h in range(num_heads):
        lo = h * head_dim
        q_h = q_all[:, lo:lo + head_dim]   # (Tq, Dh)
        k_h = k_all[:, lo:lo + head_dim]   # (S,  Dh)
        v_h = v_all[:, lo:lo + head_dim]   # (S,  Dh)

        # q @ k^T without an explicit transpose: contract last dims.
        s = jax.lax.dot_general(q_h, k_h, (((1,), (1,)), ((), ())),
                                preferred_element_type=jnp.float32) * scale   # (Tq, S)
        # Finite "-inf" (NaN-safe for fully-masked rows); plain Python literal so the
        # kernel does not capture a traced constant.
        s = jnp.where(mask0, -1e30, s)

        m = jnp.max(s, axis=-1, keepdims=True)
        e = jnp.exp(s - m)
        denom = jnp.sum(e, axis=-1, keepdims=True)
        attn = e * pl.reciprocal(denom, approx=False)
        # TODO(synk): training-mode attention dropout (pltpu.prng_seed/prng_random_bits).

        ctx_h = jnp.dot(attn.astype(v_h.dtype), v_h,
                        preferred_element_type=jnp.float32)                   # (Tq, Dh)
        attn_acc = attn_acc + jnp.dot(ctx_h.astype(wo_ref.dtype),
                                      wo_ref[lo:lo + head_dim, :],
                                      preferred_element_type=jnp.float32)     # (Tq, D)

    attn_out = attn_acc + bo_ref[...].astype(jnp.float32)

    # ---- residual 1 ----
    x1 = x_q.astype(jnp.float32) + attn_out

    # ---- LayerNorm2 + FeedForward (GELU exact) ----
    xn2 = _layer_norm(x1, ln2_g_ref[...], ln2_b_ref[...], eps)
    h1 = jnp.dot(xn2.astype(w1_ref.dtype), w1_ref[...],
                 preferred_element_type=jnp.float32) + b1_ref[...].astype(jnp.float32)
    g = _gelu_erf(h1)
    ff = jnp.dot(g.astype(w2_ref.dtype), w2_ref[...],
                 preferred_element_type=jnp.float32) + b2_ref[...].astype(jnp.float32)
    # TODO(synk): training-mode dropout in FeedForward; eval mode = identity.

    # ---- residual 2 + lane-dense (Tq, D) store ----
    o_ref[0] = (x1 + ff).astype(o_ref.dtype)


def encoder_block(embedding, mask, params, *, num_heads, eps=1e-5, q_tile=None):
    """embedding: (B,S,D); mask: (B,S,S) int (1=keep, 0=mask); params: dict of weights."""
    B, S, D = embedding.shape
    assert D % num_heads == 0
    head_dim = D // num_heads
    if q_tile is None:
        q_tile = S if S <= 128 else 128
    assert S % q_tile == 0
    n_q = S // q_tile
    d_ff = params["w1"].shape[1]
    scale = 1.0 / math.sqrt(head_dim)   # config['edu'] = False path

    kernel = functools.partial(
        _encoder_block_kernel,
        num_heads=num_heads, head_dim=head_dim, scale=scale, eps=eps,
    )

    mask = mask.astype(jnp.int32)

    def const(b, q):  # weights / params: same block for every grid step
        return (0, 0)

    return pl.pallas_call(
        kernel,
        out_shape=jax.ShapeDtypeStruct((B, S, D), embedding.dtype),
        grid_spec=pltpu.PrefetchScalarGridSpec(
            num_scalar_prefetch=0,
            grid=(B, n_q),
            in_specs=[
                pl.BlockSpec((1, q_tile, D), lambda b, q: (b, q, 0)),  # x (q rows)
                pl.BlockSpec((1, S, D),      lambda b, q: (b, 0, 0)),  # x (full seq, resident)
                pl.BlockSpec((1, q_tile, S), lambda b, q: (b, q, 0)),  # mask rows
                pl.BlockSpec((1, D), const),                           # ln1 gamma
                pl.BlockSpec((1, D), const),                           # ln1 beta
                pl.BlockSpec((D, 3 * D), const),                       # fused Wqkv
                pl.BlockSpec((D, D), const),                           # Wo
                pl.BlockSpec((1, D), const),                           # Wo bias
                pl.BlockSpec((1, D), const),                           # ln2 gamma
                pl.BlockSpec((1, D), const),                           # ln2 beta
                pl.BlockSpec((D, d_ff), const),                        # ff1 W
                pl.BlockSpec((1, d_ff), const),                        # ff1 b
                pl.BlockSpec((d_ff, D), const),                        # ff2 W
                pl.BlockSpec((1, D), const),                           # ff2 b
            ],
            out_specs=pl.BlockSpec((1, q_tile, D), lambda b, q: (b, q, 0)),
        ),
        compiler_params=pltpu.CompilerParams(
            dimension_semantics=("parallel", "parallel"),
            vmem_limit_bytes=32 * 1024 * 1024,
        ),
    )(
        embedding, embedding, mask,
        params["ln1_g"], params["ln1_b"],
        params["w_qkv"], params["wo"], params["bo"],
        params["ln2_g"], params["ln2_b"],
        params["w1"], params["b1"], params["w2"], params["b2"],
    )


def encoder_block_reference(x, mask, params, *, num_heads, eps=1e-5):
    """Pure-JAX reference mirroring the PyTorch EncoderBlock (edu=False, eval mode)."""
    def ln(z, g, b):
        mu = jnp.mean(z, axis=-1, keepdims=True)
        var = jnp.mean(jnp.square(z - mu), axis=-1, keepdims=True)
        return (z - mu) / jnp.sqrt(var + eps) * g + b

    D = x.shape[-1]
    Dh = D // num_heads
    xn = ln(x, params["ln1_g"], params["ln1_b"])
    qkv = xn @ params["w_qkv"]                      # (B,S,3D)
    q, k, v = qkv[..., :D], qkv[..., D:2 * D], qkv[..., 2 * D:]
    ctxs = []
    for h in range(num_heads):
        sl = slice(h * Dh, (h + 1) * Dh)
        s = jnp.einsum("bqd,bkd->bqk", q[..., sl], k[..., sl]) / math.sqrt(Dh)
        s = jnp.where(mask == 0, -jnp.inf, s)
        a = jax.nn.softmax(s, axis=-1)
        ctxs.append(jnp.einsum("bqk,bkd->bqd", a, v[..., sl]))
    attn_out = jnp.concatenate(ctxs, axis=-1) @ params["wo"] + params["bo"]
    x1 = x + attn_out
    xn2 = ln(x1, params["ln2_g"], params["ln2_b"])
    h1 = xn2 @ params["w1"] + params["b1"]
    g = jax.nn.gelu(h1, approximate=False)          # nn.GELU default = exact erf
    ff = g @ params["w2"] + params["b2"]
    return x1 + ff


if __name__ == "__main__":
    key = jax.random.PRNGKey(0)
    B, S, D, H, D_FF = 2, 16, 128, 4, 256   # embed_size=128, 4 heads (head_dim=32), ff=256

    keys = jax.random.split(key, 12)
    x = jax.random.normal(keys[0], (B, S, D), dtype=jnp.float32)

    def unif(k, shape, fan_in):
        bound = 1.0 / math.sqrt(fan_in)
        return jax.random.uniform(k, shape, jnp.float32, -bound, bound)

    # nn.Linear weights are stored pre-transposed to the x @ W layout; per-head
    # Wq/Wk/Wv are concatenated head-major into one fused (D, 3D) matrix.
    params = dict(
        ln1_g=1.0 + 0.1 * jax.random.normal(keys[1], (1, D), jnp.float32),
        ln1_b=0.1 * jax.random.normal(keys[2], (1, D), jnp.float32),
        w_qkv=unif(keys[3], (D, 3 * D), D),
        wo=unif(keys[4], (D, D), D),
        bo=unif(keys[5], (1, D), D),
        ln2_g=1.0 + 0.1 * jax.random.normal(keys[6], (1, D), jnp.float32),
        ln2_b=0.1 * jax.random.normal(keys[7], (1, D), jnp.float32),
        w1=unif(keys[8], (D, D_FF), D),
        b1=unif(keys[9], (1, D_FF), D),
        w2=unif(keys[10], (D_FF, D), D_FF),
        b2=unif(keys[11], (1, D), D_FF),
    )

    # Causal mask (1 = attend, 0 = masked).
    causal = jnp.tril(jnp.ones((S, S), dtype=jnp.int32))
    mask = jnp.broadcast_to(causal, (B, S, S)).astype(jnp.int32)

    out = encoder_block(x, mask, params, num_heads=H)
    out = jax.block_until_ready(out)

    ref = encoder_block_reference(x, mask, params, num_heads=H)
    assert out.shape == (B, S, D)
    max_err = jnp.max(jnp.abs(out - ref))
    assert jnp.allclose(out, ref, atol=1e-4, rtol=1e-4), f"mismatch vs reference, max err {max_err}"

    print("KERNEL_OK")
</pallas_src>

<mosaic_0001>
module attributes {stable_mosaic.version = 11 : i64} {
  func.func @_encoder_block_kernel(%arg0: i32, %arg1: i32, %arg2: memref<1x16x128xf32, #tpu.memory_space<vmem>>, %arg3: memref<1x16x128xf32, #tpu.memory_space<vmem>>, %arg4: memref<1x16x16xi32, #tpu.memory_space<vmem>>, %arg5: memref<1x128xf32, #tpu.memory_space<vmem>>, %arg6: memref<1x128xf32, #tpu.memory_space<vmem>>, %arg7: memref<128x384xf32, #tpu.memory_space<vmem>>, %arg8: memref<128x128xf32, #tpu.memory_space<vmem>>, %arg9: memref<1x128xf32, #tpu.memory_space<vmem>>, %arg10: memref<1x128xf32, #tpu.memory_space<vmem>>, %arg11: memref<1x128xf32, #tpu.memory_space<vmem>>, %arg12: memref<128x256xf32, #tpu.memory_space<vmem>>, %arg13: memref<1x256xf32, #tpu.memory_space<vmem>>, %arg14: memref<256x128xf32, #tpu.memory_space<vmem>>, %arg15: memref<1x128xf32, #tpu.memory_space<vmem>>, %arg16: memref<1x16x128xf32, #tpu.memory_space<vmem>>) attributes {dimension_semantics = [#tpu.dimension_semantics<parallel>, #tpu.dimension_semantics<parallel>], iteration_bounds = array<i64: 2, 1>, scalar_prefetch = 0 : i64, scratch_operands = 0 : i64, tpu.core_type = #tpu.core_type<tc>, window_params = [{transform_indices = @transform_0, window_bounds = array<i64: 1, 16, 128>}, {transform_indices = @transform_1, window_bounds = array<i64: 1, 16, 128>}, {transform_indices = @transform_2, window_bounds = array<i64: 1, 16, 16>}, {pipeline_mode = #tpu.pipeline_mode<synchronous>, transform_indices = @transform_3, window_bounds = array<i64: 1, 128>}, {pipeline_mode = #tpu.pipeline_mode<synchronous>, transform_indices = @transform_4, window_bounds = array<i64: 1, 128>}, {pipeline_mode = #tpu.pipeline_mode<synchronous>, transform_indices = @transform_5, window_bounds = array<i64: 128, 384>}, {pipeline_mode = #tpu.pipeline_mode<synchronous>, transform_indices = @transform_6, window_bounds = array<i64: 128, 128>}, {pipeline_mode = #tpu.pipeline_mode<synchronous>, transform_indices = @transform_7, window_bounds = array<i64: 1, 128>}, {pipeline_mode = #tpu.pipeline_mode<synchronous>, transform_indices = @transform_8, window_bounds = array<i64: 1, 128>}, {pipeline_mode = #tpu.pipeline_mode<synchronous>, transform_indices = @transform_9, window_bounds = array<i64: 1, 128>}, {pipeline_mode = #tpu.pipeline_mode<synchronous>, transform_indices = @transform_10, window_bounds = array<i64: 128, 256>}, {pipeline_mode = #tpu.pipeline_mode<synchronous>, transform_indices = @transform_11, window_bounds = array<i64: 1, 256>}, {pipeline_mode = #tpu.pipeline_mode<synchronous>, transform_indices = @transform_12, window_bounds = array<i64: 256, 128>}, {pipeline_mode = #tpu.pipeline_mode<synchronous>, transform_indices = @transform_13, window_bounds = array<i64: 1, 128>}, {transform_indices = @transform_14, window_bounds = array<i64: 1, 16, 128>}]} {
    %c0 = arith.constant 0 : index
    %c0_0 = arith.constant 0 : index
    %c0_1 = arith.constant 0 : index
    %0 = vector.load %arg2[%c0, %c0_0, %c0_1] : memref<1x16x128xf32, #tpu.memory_space<vmem>>, vector<1x16x128xf32>
    %1 = vector.shape_cast %0 : vector<1x16x128xf32> to vector<16x128xf32>
    %c0_2 = arith.constant 0 : index
    %c0_3 = arith.constant 0 : index
    %c0_4 = arith.constant 0 : index
    %2 = vector.load %arg3[%c0_2, %c0_3, %c0_4] : memref<1x16x128xf32, #tpu.memory_space<vmem>>, vector<1x16x128xf32>
    %3 = vector.shape_cast %2 : vector<1x16x128xf32> to vector<16x128xf32>
    %c0_5 = arith.constant 0 : index
    %c0_6 = arith.constant 0 : index
    %c0_7 = arith.constant 0 : index
    %4 = vector.load %arg4[%c0_5, %c0_6, %c0_7] : memref<1x16x16xi32, #tpu.memory_space<vmem>>, vector<1x16x16xi32>
    %5 = vector.shape_cast %4 : vector<1x16x16xi32> to vector<16x16xi32>
    %c0_i32 = arith.constant 0 : i32
    %6 = vector.broadcast %c0_i32 : i32 to vector<16x16xi32>
    %7 = arith.cmpi eq, %5, %6 : vector<16x16xi32>
    %c0_8 = arith.constant 0 : index
    %c0_9 = arith.constant 0 : index
    %8 = vector.load %arg5[%c0_8, %c0_9] : memref<1x128xf32, #tpu.memory_space<vmem>>, vector<1x128xf32>
    %c0_10 = arith.constant 0 : index
    %c0_11 = arith.constant 0 : index
    %9 = vector.load %arg6[%c0_10, %c0_11] : memref<1x128xf32, #tpu.memory_space<vmem>>, vector<1x128xf32>
    %cst = arith.constant dense<0.000000e+00> : vector<16xf32>
    %10 = vector.multi_reduction <add>, %1, %cst [1] : vector<16x128xf32> to vector<16xf32>
    %11 = vector.shape_cast %10 : vector<16xf32> to vector<16x1xf32>
    %cst_12 = arith.constant 1.280000e+02 : f32
    %12 = vector.broadcast %cst_12 : f32 to vector<16x1xf32>
    %13 = arith.divf %11, %12 : vector<16x1xf32>
    %14 = vector.broadcast %13 : vector<16x1xf32> to vector<16x128xf32>
    %15 = arith.subf %1, %14 : vector<16x128xf32>
    %16 = arith.mulf %15, %15 : vector<16x128xf32>
    %cst_13 = arith.constant dense<0.000000e+00> : vector<16xf32>
    %17 = vector.multi_reduction <add>, %16, %cst_13 [1] : vector<16x128xf32> to vector<16xf32>
    %18 = vector.shape_cast %17 : vector<16xf32> to vector<16x1xf32>
    %cst_14 = arith.constant 1.280000e+02 : f32
    %19 = vector.broadcast %cst_14 : f32 to vector<16x1xf32>
    %20 = arith.divf %18, %19 : vector<16x1xf32>
    %cst_15 = arith.constant 9.99999974E-6 : f32
    %21 = vector.broadcast %cst_15 : f32 to vector<16x1xf32>
    %22 = arith.addf %20, %21 : vector<16x1xf32>
    %23 = math.rsqrt %22 : vector<16x1xf32>
    %24 = vector.broadcast %13 : vector<16x1xf32> to vector<16x128xf32>
    %25 = arith.subf %1, %24 : vector<16x128xf32>
    %26 = vector.broadcast %23 : vector<16x1xf32> to vector<16x128xf32>
    %27 = arith.mulf %25, %26 : vector<16x128xf32>
    %28 = vector.broadcast %8 : vector<1x128xf32> to vector<16x128xf32>
    %29 = arith.mulf %27, %28 : vector<16x128xf32>
    %30 = vector.broadcast %9 : vector<1x128xf32> to vector<16x128xf32>
    %31 = arith.addf %29, %30 : vector<16x128xf32>
    %c0_16 = arith.constant 0 : index
    %c0_17 = arith.constant 0 : index
    %32 = vector.load %arg5[%c0_16, %c0_17] : memref<1x128xf32, #tpu.memory_space<vmem>>, vector<1x128xf32>
    %c0_18 = arith.constant 0 : index
    %c0_19 = arith.constant 0 : index
    %33 = vector.load %arg6[%c0_18, %c0_19] : memref<1x128xf32, #tpu.memory_space<vmem>>, vector<1x128xf32>
    %cst_20 = arith.constant dense<0.000000e+00> : vector<16xf32>
    %34 = vector.multi_reduction <add>, %3, %cst_20 [1] : vector<16x128xf32> to vector<16xf32>
    %35 = vector.shape_cast %34 : vector<16xf32> to vector<16x1xf32>
    %cst_21 = arith.constant 1.280000e+02 : f32
    %36 = vector.broadcast %cst_21 : f32 to vector<16x1xf32>
    %37 = arith.divf %35, %36 : vector<16x1xf32>
    %38 = vector.broadcast %37 : vector<16x1xf32> to vector<16x128xf32>
    %39 = arith.subf %3, %38 : vector<16x128xf32>
    %40 = arith.mulf %39, %39 : vector<16x128xf32>
    %cst_22 = arith.constant dense<0.000000e+00> : vector<16xf32>
    %41 = vector.multi_reduction <add>, %40, %cst_22 [1] : vector<16x128xf32> to vector<16xf32>
    %42 = vector.shape_cast %41 : vector<16xf32> to vector<16x1xf32>
    %cst_23 = arith.constant 1.280000e+02 : f32
    %43 = vector.broadcast %cst_23 : f32 to vector<16x1xf32>
    %44 = arith.divf %42, %43 : vector<16x1xf32>
    %cst_24 = arith.constant 9.99999974E-6 : f32
    %45 = vector.broadcast %cst_24 : f32 to vector<16x1xf32>
    %46 = arith.addf %44, %45 : vector<16x1xf32>
    %47 = math.rsqrt %46 : vector<16x1xf32>
    %48 = vector.broadcast %37 : vector<16x1xf32> to vector<16x128xf32>
    %49 = arith.subf %3, %48 : vector<16x128xf32>
    %50 = vector.broadcast %47 : vector<16x1xf32> to vector<16x128xf32>
    %51 = arith.mulf %49, %50 : vector<16x128xf32>
    %52 = vector.broadcast %32 : vector<1x128xf32> to vector<16x128xf32>
    %53 = arith.mulf %51, %52 : vector<16x128xf32>
    %54 = vector.broadcast %33 : vector<1x128xf32> to vector<16x128xf32>
    %55 = arith.addf %53, %54 : vector<16x128xf32>
    %c0_25 = arith.constant 0 : index
    %c0_26 = arith.constant 0 : index
    %56 = vector.load %arg7[%c0_25, %c0_26] : memref<128x384xf32, #tpu.memory_space<vmem>>, vector<128x128xf32>
    %cst_27 = arith.constant dense<0.000000e+00> : vector<16x128xf32>
    %57 = tpu.matmul %31, %56, %cst_27 {dimension_numbers = #tpu.dot_dimension_numbers<[1], [0], [0], [1], [0, 0, 1, 1], [], []>} : vector<16x128xf32>, vector<128x128xf32>, vector<16x128xf32> -> vector<16x128xf32>
    %c0_28 = arith.constant 0 : index
    %c128 = arith.constant 128 : index
    %58 = vector.load %arg7[%c0_28, %c128] : memref<128x384xf32, #tpu.memory_space<vmem>>, vector<128x256xf32>
    %cst_29 = arith.constant dense<0.000000e+00> : vector<16x256xf32>
    %59 = tpu.matmul %55, %58, %cst_29 {dimension_numbers = #tpu.dot_dimension_numbers<[1], [0], [0], [1], [0, 0, 1, 1], [], []>} : vector<16x128xf32>, vector<128x256xf32>, vector<16x256xf32> -> vector<16x256xf32>
    %60 = vector.extract_strided_slice %59 {offsets = [0, 0], sizes = [16, 128], strides = [1, 1]} : vector<16x256xf32> to vector<16x128xf32>
    %61 = vector.extract_strided_slice %59 {offsets = [0, 128], sizes = [16, 128], strides = [1, 1]} : vector<16x256xf32> to vector<16x128xf32>
    %cst_30 = arith.constant 0.000000e+00 : f32
    %62 = vector.broadcast %cst_30 : f32 to vector<16x128xf32>
    %63 = vector.extract_strided_slice %57 {offsets = [0, 0], sizes = [16, 32], strides = [1, 1]} : vector<16x128xf32> to vector<16x32xf32>
    %64 = vector.extract_strided_slice %60 {offsets = [0, 0], sizes = [16, 32], strides = [1, 1]} : vector<16x128xf32> to vector<16x32xf32>
    %65 = vector.extract_strided_slice %61 {offsets = [0, 0], sizes = [16, 32], strides = [1, 1]} : vector<16x128xf32> to vector<16x32xf32>
    %cst_31 = arith.constant dense<0.000000e+00> : vector<16x16xf32>
    %66 = tpu.matmul %63, %64, %cst_31 {dimension_numbers = #tpu.dot_dimension_numbers<[1], [1], [0], [0], [0, 0, 1, 0], [], []>} : vector<16x32xf32>, vector<16x32xf32>, vector<16x16xf32> -> vector<16x16xf32>
    %cst_32 = arith.constant 0.176776692 : f32
    %67 = vector.broadcast %cst_32 : f32 to vector<16x16xf32>
    %68 = arith.mulf %66, %67 : vector<16x16xf32>
    %cst_33 = arith.constant -1.000000e+30 : f32
    %69 = vector.broadcast %cst_33 : f32 to vector<16x16xf32>
    %70 = arith.select %7, %69, %68 : vector<16x16xi1>, vector<16x16xf32>
    %cst_34 = arith.constant dense<0xFF800000> : vector<16xf32>
    %71 = vector.multi_reduction <maximumf>, %70, %cst_34 [1] : vector<16x16xf32> to vector<16xf32>
    %72 = vector.shape_cast %71 : vector<16xf32> to vector<16x1xf32>
    %73 = vector.broadcast %72 : vector<16x1xf32> to vector<16x16xf32>
    %74 = arith.subf %70, %73 : vector<16x16xf32>
    %75 = math.exp %74 : vector<16x16xf32>
    %cst_35 = arith.constant dense<0.000000e+00> : vector<16xf32>
    %76 = vector.multi_reduction <add>, %75, %cst_35 [1] : vector<16x16xf32> to vector<16xf32>
    %77 = vector.shape_cast %76 : vector<16xf32> to vector<16x1xf32>
    %78 = tpu.reciprocal %77 : vector<16x1xf32> -> vector<16x1xf32>
    %79 = vector.broadcast %78 : vector<16x1xf32> to vector<16x16xf32>
    %80 = arith.mulf %75, %79 : vector<16x16xf32>
    %cst_36 = arith.constant dense<0.000000e+00> : vector<16x32xf32>
    %81 = tpu.matmul %80, %65, %cst_36 {dimension_numbers = #tpu.dot_dimension_numbers<[1], [0], [0], [1], [0, 0, 1, 1], [], []>} : vector<16x16xf32>, vector<16x32xf32>, vector<16x32xf32> -> vector<16x32xf32>
    %c0_37 = arith.constant 0 : index
    %c0_38 = arith.constant 0 : index
    %82 = vector.load %arg8[%c0_37, %c0_38] : memref<128x128xf32, #tpu.memory_space<vmem>>, vector<32x128xf32>
    %cst_39 = arith.constant dense<0.000000e+00> : vector<16x128xf32>
    %83 = tpu.matmul %81, %82, %cst_39 {dimension_numbers = #tpu.dot_dimension_numbers<[1], [0], [0], [1], [0, 0, 1, 1], [], []>} : vector<16x32xf32>, vector<32x128xf32>, vector<16x128xf32> -> vector<16x128xf32>
    %84 = arith.addf %62, %83 : vector<16x128xf32>
    %85 = vector.extract_strided_slice %57 {offsets = [0, 32], sizes = [16, 32], strides = [1, 1]} : vector<16x128xf32> to vector<16x32xf32>
    %86 = vector.extract_strided_slice %60 {offsets = [0, 32], sizes = [16, 32], strides = [1, 1]} : vector<16x128xf32> to vector<16x32xf32>
    %87 = vector.extract_strided_slice %61 {offsets = [0, 32], sizes = [16, 32], strides = [1, 1]} : vector<16x128xf32> to vector<16x32xf32>
    %cst_40 = arith.constant dense<0.000000e+00> : vector<16x16xf32>
    %88 = tpu.matmul %85, %86, %cst_40 {dimension_numbers = #tpu.dot_dimension_numbers<[1], [1], [0], [0], [0, 0, 1, 0], [], []>} : vector<16x32xf32>, vector<16x32xf32>, vector<16x16xf32> -> vector<16x16xf32>
    %cst_41 = arith.constant 0.176776692 : f32
    %89 = vector.broadcast %cst_41 : f32 to vector<16x16xf32>
    %90 = arith.mulf %88, %89 : vector<16x16xf32>
    %cst_42 = arith.constant -1.000000e+30 : f32
    %91 = vector.broadcast %cst_42 : f32 to vector<16x16xf32>
    %92 = arith.select %7, %91, %90 : vector<16x16xi1>, vector<16x16xf32>
    %cst_43 = arith.constant dense<0xFF800000> : vector<16xf32>
    %93 = vector.multi_reduction <maximumf>, %92, %cst_43 [1] : vector<16x16xf32> to vector<16xf32>
    %94 = vector.shape_cast %93 : vector<16xf32> to vector<16x1xf32>
    %95 = vector.broadcast %94 : vector<16x1xf32> to vector<16x16xf32>
    %96 = arith.subf %92, %95 : vector<16x16xf32>
    %97 = math.exp %96 : vector<16x16xf32>
    %cst_44 = arith.constant dense<0.000000e+00> : vector<16xf32>
    %98 = vector.multi_reduction <add>, %97, %cst_44 [1] : vector<16x16xf32> to vector<16xf32>
    %99 = vector.shape_cast %98 : vector<16xf32> to vector<16x1xf32>
    %100 = tpu.reciprocal %99 : vector<16x1xf32> -> vector<16x1xf32>
    %101 = vector.broadcast %100 : vector<16x1xf32> to vector<16x16xf32>
    %102 = arith.mulf %97, %101 : vector<16x16xf32>
    %cst_45 = arith.constant dense<0.000000e+00> : vector<16x32xf32>
    %103 = tpu.matmul %102, %87, %cst_45 {dimension_numbers = #tpu.dot_dimension_numbers<[1], [0], [0], [1], [0, 0, 1, 1], [], []>} : vector<16x16xf32>, vector<16x32xf32>, vector<16x32xf32> -> vector<16x32xf32>
    %c32 = arith.constant 32 : index
    %c0_46 = arith.constant 0 : index
    %104 = vector.load %arg8[%c32, %c0_46] : memref<128x128xf32, #tpu.memory_space<vmem>>, vector<32x128xf32>
    %cst_47 = arith.constant dense<0.000000e+00> : vector<16x128xf32>
    %105 = tpu.matmul %103, %104, %cst_47 {dimension_numbers = #tpu.dot_dimension_numbers<[1], [0], [0], [1], [0, 0, 1, 1], [], []>} : vector<16x32xf32>, vector<32x128xf32>, vector<16x128xf32> -> vector<16x128xf32>
    %106 = arith.addf %84, %105 : vector<16x128xf32>
    %107 = vector.extract_strided_slice %57 {offsets = [0, 64], sizes = [16, 32], strides = [1, 1]} : vector<16x128xf32> to vector<16x32xf32>
    %108 = vector.extract_strided_slice %60 {offsets = [0, 64], sizes = [16, 32], strides = [1, 1]} : vector<16x128xf32> to vector<16x32xf32>
    %109 = vector.extract_strided_slice %61 {offsets = [0, 64], sizes = [16, 32], strides = [1, 1]} : vector<16x128xf32> to vector<16x32xf32>
    %cst_48 = arith.constant dense<0.000000e+00> : vector<16x16xf32>
    %110 = tpu.matmul %107, %108, %cst_48 {dimension_numbers = #tpu.dot_dimension_numbers<[1], [1], [0], [0], [0, 0, 1, 0], [], []>} : vector<16x32xf32>, vector<16x32xf32>, vector<16x16xf32> -> vector<16x16xf32>
    %cst_49 = arith.constant 0.176776692 : f32
    %111 = vector.broadcast %cst_49 : f32 to vector<16x16xf32>
    %112 = arith.mulf %110, %111 : vector<16x16xf32>
    %cst_50 = arith.constant -1.000000e+30 : f32
    %113 = vector.broadcast %cst_50 : f32 to vector<16x16xf32>
    %114 = arith.select %7, %113, %112 : vector<16x16xi1>, vector<16x16xf32>
    %cst_51 = arith.constant dense<0xFF800000> : vector<16xf32>
    %115 = vector.multi_reduction <maximumf>, %114, %cst_51 [1] : vector<16x16xf32> to vector<16xf32>
    %116 = vector.shape_cast %115 : vector<16xf32> to vector<16x1xf32>
    %117 = vector.broadcast %116 : vector<16x1xf32> to vector<16x16xf32>
    %118 = arith.subf %114, %117 : vector<16x16xf32>
    %119 = math.exp %118 : vector<16x16xf32>
    %cst_52 = arith.constant dense<0.000000e+00> : vector<16xf32>
    %120 = vector.multi_reduction <add>, %119, %cst_52 [1] : vector<16x16xf32> to vector<16xf32>
    %121 = vector.shape_cast %120 : vector<16xf32> to vector<16x1xf32>
    %122 = tpu.reciprocal %121 : vector<16x1xf32> -> vector<16x1xf32>
    %123 = vector.broadcast %122 : vector<16x1xf32> to vector<16x16xf32>
    %124 = arith.mulf %119, %123 : vector<16x16xf32>
    %cst_53 = arith.constant dense<0.000000e+00> : vector<16x32xf32>
    %125 = tpu.matmul %124, %109, %cst_53 {dimension_numbers = #tpu.dot_dimension_numbers<[1], [0], [0], [1], [0, 0, 1, 1], [], []>} : vector<16x16xf32>, vector<16x32xf32>, vector<16x32xf32> -> vector<16x32xf32>
    %c64 = arith.constant 64 : index
    %c0_54 = arith.constant 0 : index
    %126 = vector.load %arg8[%c64, %c0_54] : memref<128x128xf32, #tpu.memory_space<vmem>>, vector<32x128xf32>
    %cst_55 = arith.constant dense<0.000000e+00> : vector<16x128xf32>
    %127 = tpu.matmul %125, %126, %cst_55 {dimension_numbers = #tpu.dot_dimension_numbers<[1], [0], [0], [1], [0, 0, 1, 1], [], []>} : vector<16x32xf32>, vector<32x128xf32>, vector<16x128xf32> -> vector<16x128xf32>
    %128 = arith.addf %106, %127 : vector<16x128xf32>
    %129 = vector.extract_strided_slice %57 {offsets = [0, 96], sizes = [16, 32], strides = [1, 1]} : vector<16x128xf32> to vector<16x32xf32>
    %130 = vector.extract_strided_slice %60 {offsets = [0, 96], sizes = [16, 32], strides = [1, 1]} : vector<16x128xf32> to vector<16x32xf32>
    %131 = vector.extract_strided_slice %61 {offsets = [0, 96], sizes = [16, 32], strides = [1, 1]} : vector<16x128xf32> to vector<16x32xf32>
    %cst_56 = arith.constant dense<0.000000e+00> : vector<16x16xf32>
    %132 = tpu.matmul %129, %130, %cst_56 {dimension_numbers = #tpu.dot_dimension_numbers<[1], [1], [0], [0], [0, 0, 1, 0], [], []>} : vector<16x32xf32>, vector<16x32xf32>, vector<16x16xf32> -> vector<16x16xf32>
    %cst_57 = arith.constant 0.176776692 : f32
    %133 = vector.broadcast %cst_57 : f32 to vector<16x16xf32>
    %134 = arith.mulf %132, %133 : vector<16x16xf32>
    %cst_58 = arith.constant -1.000000e+30 : f32
    %135 = vector.broadcast %cst_58 : f32 to vector<16x16xf32>
    %136 = arith.select %7, %135, %134 : vector<16x16xi1>, vector<16x16xf32>
    %cst_59 = arith.constant dense<0xFF800000> : vector<16xf32>
    %137 = vector.multi_reduction <maximumf>, %136, %cst_59 [1] : vector<16x16xf32> to vector<16xf32>
    %138 = vector.shape_cast %137 : vector<16xf32> to vector<16x1xf32>
    %139 = vector.broadcast %138 : vector<16x1xf32> to vector<16x16xf32>
    %140 = arith.subf %136, %139 : vector<16x16xf32>
    %141 = math.exp %140 : vector<16x16xf32>
    %cst_60 = arith.constant dense<0.000000e+00> : vector<16xf32>
    %142 = vector.multi_reduction <add>, %141, %cst_60 [1] : vector<16x16xf32> to vector<16xf32>
    %143 = vector.shape_cast %142 : vector<16xf32> to vector<16x1xf32>
    %144 = tpu.reciprocal %143 : vector<16x1xf32> -> vector<16x1xf32>
    %145 = vector.broadcast %144 : vector<16x1xf32> to vector<16x16xf32>
    %146 = arith.mulf %141, %145 : vector<16x16xf32>
    %cst_61 = arith.constant dense<0.000000e+00> : vector<16x32xf32>
    %147 = tpu.matmul %146, %131, %cst_61 {dimension_numbers = #tpu.dot_dimension_numbers<[1], [0], [0], [1], [0, 0, 1, 1], [], []>} : vector<16x16xf32>, vector<16x32xf32>, vector<16x32xf32> -> vector<16x32xf32>
    %c96 = arith.constant 96 : index
    %c0_62 = arith.constant 0 : index
    %148 = vector.load %arg8[%c96, %c0_62] : memref<128x128xf32, #tpu.memory_space<vmem>>, vector<32x128xf32>
    %cst_63 = arith.constant dense<0.000000e+00> : vector<16x128xf32>
    %149 = tpu.matmul %147, %148, %cst_63 {dimension_numbers = #tpu.dot_dimension_numbers<[1], [0], [0], [1], [0, 0, 1, 1], [], []>} : vector<16x32xf32>, vector<32x128xf32>, vector<16x128xf32> -> vector<16x128xf32>
    %150 = arith.addf %128, %149 : vector<16x128xf32>
    %c0_64 = arith.constant 0 : index
    %c0_65 = arith.constant 0 : index
    %151 = vector.load %arg9[%c0_64, %c0_65] : memref<1x128xf32, #tpu.memory_space<vmem>>, vector<1x128xf32>
    %152 = vector.broadcast %151 : vector<1x128xf32> to vector<16x128xf32>
    %153 = arith.addf %150, %152 : vector<16x128xf32>
    %154 = arith.addf %1, %153 : vector<16x128xf32>
    %c0_66 = arith.constant 0 : index
    %c0_67 = arith.constant 0 : index
    %155 = vector.load %arg10[%c0_66, %c0_67] : memref<1x128xf32, #tpu.memory_space<vmem>>, vector<1x128xf32>
    %c0_68 = arith.constant 0 : index
    %c0_69 = arith.constant 0 : index
    %156 = vector.load %arg11[%c0_68, %c0_69] : memref<1x128xf32, #tpu.memory_space<vmem>>, vector<1x128xf32>
    %cst_70 = arith.constant dense<0.000000e+00> : vector<16xf32>
    %157 = vector.multi_reduction <add>, %154, %cst_70 [1] : vector<16x128xf32> to vector<16xf32>
    %158 = vector.shape_cast %157 : vector<16xf32> to vector<16x1xf32>
    %cst_71 = arith.constant 1.280000e+02 : f32
    %159 = vector.broadcast %cst_71 : f32 to vector<16x1xf32>
    %160 = arith.divf %158, %159 : vector<16x1xf32>
    %161 = vector.broadcast %160 : vector<16x1xf32> to vector<16x128xf32>
    %162 = arith.subf %154, %161 : vector<16x128xf32>
    %163 = arith.mulf %162, %162 : vector<16x128xf32>
    %cst_72 = arith.constant dense<0.000000e+00> : vector<16xf32>
    %164 = vector.multi_reduction <add>, %163, %cst_72 [1] : vector<16x128xf32> to vector<16xf32>
    %165 = vector.shape_cast %164 : vector<16xf32> to vector<16x1xf32>
    %cst_73 = arith.constant 1.280000e+02 : f32
    %166 = vector.broadcast %cst_73 : f32 to vector<16x1xf32>
    %167 = arith.divf %165, %166 : vector<16x1xf32>
    %cst_74 = arith.constant 9.99999974E-6 : f32
    %168 = vector.broadcast %cst_74 : f32 to vector<16x1xf32>
    %169 = arith.addf %167, %168 : vector<16x1xf32>
    %170 = math.rsqrt %169 : vector<16x1xf32>
    %171 = vector.broadcast %160 : vector<16x1xf32> to vector<16x128xf32>
    %172 = arith.subf %154, %171 : vector<16x128xf32>
    %173 = vector.broadcast %170 : vector<16x1xf32> to vector<16x128xf32>
    %174 = arith.mulf %172, %173 : vector<16x128xf32>
    %175 = vector.broadcast %155 : vector<1x128xf32> to vector<16x128xf32>
    %176 = arith.mulf %174, %175 : vector<16x128xf32>
    %177 = vector.broadcast %156 : vector<1x128xf32> to vector<16x128xf32>
    %178 = arith.addf %176, %177 : vector<16x128xf32>
    %c0_75 = arith.constant 0 : index
    %c0_76 = arith.constant 0 : index
    %179 = vector.load %arg12[%c0_75, %c0_76] : memref<128x256xf32, #tpu.memory_space<vmem>>, vector<128x256xf32>
    %cst_77 = arith.constant dense<0.000000e+00> : vector<16x256xf32>
    %180 = tpu.matmul %178, %179, %cst_77 {dimension_numbers = #tpu.dot_dimension_numbers<[1], [0], [0], [1], [0, 0, 1, 1], [], []>} : vector<16x128xf32>, vector<128x256xf32>, vector<16x256xf32> -> vector<16x256xf32>
    %c0_78 = arith.constant 0 : index
    %c0_79 = arith.constant 0 : index
    %181 = vector.load %arg13[%c0_78, %c0_79] : memref<1x256xf32, #tpu.memory_space<vmem>>, vector<1x256xf32>
    %182 = vector.broadcast %181 : vector<1x256xf32> to vector<16x256xf32>
    %183 = arith.addf %180, %182 : vector<16x256xf32>
    %cst_80 = arith.constant 5.000000e-01 : f32
    %184 = vector.broadcast %cst_80 : f32 to vector<16x256xf32>
    %185 = arith.mulf %184, %183 : vector<16x256xf32>
    %cst_81 = arith.constant 0.707106769 : f32
    %186 = vector.broadcast %cst_81 : f32 to vector<16x256xf32>
    %187 = arith.mulf %183, %186 : vector<16x256xf32>
    %cst_82 = arith.constant 0.000000e+00 : f32
    %188 = vector.broadcast %cst_82 : f32 to vector<16x256xf32>
    %189 = arith.cmpf oge, %187, %188 : vector<16x256xf32>
    %cst_83 = arith.constant 1.000000e+00 : f32
    %cst_84 = arith.constant -1.000000e+00 : f32
    %190 = vector.broadcast %cst_83 : f32 to vector<16x256xf32>
    %191 = vector.broadcast %cst_84 : f32 to vector<16x256xf32>
    %192 = arith.select %189, %190, %191 : vector<16x256xi1>, vector<16x256xf32>
    %193 = math.absf %187 : vector<16x256xf32>
    %cst_85 = arith.constant 0.327591091 : f32
    %194 = vector.broadcast %cst_85 : f32 to vector<16x256xf32>
    %195 = arith.mulf %194, %193 : vector<16x256xf32>
    %cst_86 = arith.constant 1.000000e+00 : f32
    %196 = vector.broadcast %cst_86 : f32 to vector<16x256xf32>
    %197 = arith.addf %196, %195 : vector<16x256xf32>
    %cst_87 = arith.constant 1.000000e+00 : f32
    %198 = vector.broadcast %cst_87 : f32 to vector<16x256xf32>
    %199 = arith.divf %198, %197 : vector<16x256xf32>
    %cst_88 = arith.constant 1.06140542 : f32
    %200 = vector.broadcast %cst_88 : f32 to vector<16x256xf32>
    %201 = arith.mulf %200, %199 : vector<16x256xf32>
    %cst_89 = arith.constant -1.45315206 : f32
    %202 = vector.broadcast %cst_89 : f32 to vector<16x256xf32>
    %203 = arith.addf %201, %202 : vector<16x256xf32>
    %204 = arith.mulf %203, %199 : vector<16x256xf32>
    %cst_90 = arith.constant 1.42141378 : f32
    %205 = vector.broadcast %cst_90 : f32 to vector<16x256xf32>
    %206 = arith.addf %204, %205 : vector<16x256xf32>
    %207 = arith.mulf %206, %199 : vector<16x256xf32>
    %cst_91 = arith.constant -0.284496725 : f32
    %208 = vector.broadcast %cst_91 : f32 to vector<16x256xf32>
    %209 = arith.addf %207, %208 : vector<16x256xf32>
    %210 = arith.mulf %209, %199 : vector<16x256xf32>
    %cst_92 = arith.constant 0.254829586 : f32
    %211 = vector.broadcast %cst_92 : f32 to vector<16x256xf32>
    %212 = arith.addf %210, %211 : vector<16x256xf32>
    %213 = arith.mulf %212, %199 : vector<16x256xf32>
    %cst_93 = arith.constant 0.000000e+00 : f32
    %214 = vector.broadcast %cst_93 : f32 to vector<16x256xf32>
    %215 = arith.subf %214, %193 : vector<16x256xf32>
    %216 = arith.mulf %215, %193 : vector<16x256xf32>
    %217 = math.exp %216 : vector<16x256xf32>
    %218 = arith.mulf %213, %217 : vector<16x256xf32>
    %cst_94 = arith.constant 1.000000e+00 : f32
    %219 = vector.broadcast %cst_94 : f32 to vector<16x256xf32>
    %220 = arith.subf %219, %218 : vector<16x256xf32>
    %221 = arith.mulf %192, %220 : vector<16x256xf32>
    %cst_95 = arith.constant 1.000000e+00 : f32
    %222 = vector.broadcast %cst_95 : f32 to vector<16x256xf32>
    %223 = arith.addf %222, %221 : vector<16x256xf32>
    %224 = arith.mulf %185, %223 : vector<16x256xf32>
    %c0_96 = arith.constant 0 : index
    %c0_97 = arith.constant 0 : index
    %225 = vector.load %arg14[%c0_96, %c0_97] : memref<256x128xf32, #tpu.memory_space<vmem>>, vector<256x128xf32>
    %cst_98 = arith.constant dense<0.000000e+00> : vector<16x128xf32>
    %226 = tpu.matmul %224, %225, %cst_98 {dimension_numbers = #tpu.dot_dimension_numbers<[1], [0], [0], [1], [0, 0, 1, 1], [], []>} : vector<16x256xf32>, vector<256x128xf32>, vector<16x128xf32> -> vector<16x128xf32>
    %c0_99 = arith.constant 0 : index
    %c0_100 = arith.constant 0 : index
    %227 = vector.load %arg15[%c0_99, %c0_100] : memref<1x128xf32, #tpu.memory_space<vmem>>, vector<1x128xf32>
    %228 = vector.broadcast %227 : vector<1x128xf32> to vector<16x128xf32>
    %229 = arith.addf %226, %228 : vector<16x128xf32>
    %230 = arith.addf %154, %229 : vector<16x128xf32>
    %c0_101 = arith.constant 0 : index
    %c0_102 = arith.constant 0 : index
    %c0_103 = arith.constant 0 : index
    %231 = vector.load %arg16[%c0_101, %c0_102, %c0_103] : memref<1x16x128xf32, #tpu.memory_space<vmem>>, vector<1x16x128xf32>
    %232 = vector.shape_cast %231 : vector<1x16x128xf32> to vector<16x128xf32>
    %233 = vector.shape_cast %230 : vector<16x128xf32> to vector<1x16x128xf32>
    tpu.vector_store %arg16[%c0_101, %c0_102, %c0_103], %233 {strides = array<i32>} : memref<1x16x128xf32, #tpu.memory_space<vmem>>, vector<1x16x128xf32>,
    return
  }
  func.func @transform_0(%arg0: i32, %arg1: i32) -> (i32, i32, i32) {
    %c0_i32 = arith.constant 0 : i32
    %c0_i32_0 = arith.constant 0 : i32
    return %arg0, %arg1, %c0_i32 : i32, i32, i32
  }
  func.func @transform_1(%arg0: i32, %arg1: i32) -> (i32, i32, i32) {
    %c0_i32 = arith.constant 0 : i32
    %c0_i32_0 = arith.constant 0 : i32
    %c0_i32_1 = arith.constant 0 : i32
    return %arg0, %c0_i32, %c0_i32_0 : i32, i32, i32
  }
  func.func @transform_2(%arg0: i32, %arg1: i32) -> (i32, i32, i32) {
    %c0_i32 = arith.constant 0 : i32
    %c0_i32_0 = arith.constant 0 : i32
    return %arg0, %arg1, %c0_i32 : i32, i32, i32
  }
  func.func @transform_3(%arg0: i32, %arg1: i32) -> (i32, i32) {
    %c0_i32 = arith.constant 0 : i32
    %c0_i32_0 = arith.constant 0 : i32
    %c0_i32_1 = arith.constant 0 : i32
    return %c0_i32, %c0_i32_0 : i32, i32
  }
  func.func @transform_4(%arg0: i32, %arg1: i32) -> (i32, i32) {
    %c0_i32 = arith.constant 0 : i32
    %c0_i32_0 = arith.constant 0 : i32
    %c0_i32_1 = arith.constant 0 : i32
    return %c0_i32, %c0_i32_0 : i32, i32
  }
  func.func @transform_5(%arg0: i32, %arg1: i32) -> (i32, i32) {
    %c0_i32 = arith.constant 0 : i32
    %c0_i32_0 = arith.constant 0 : i32
    %c0_i32_1 = arith.constant 0 : i32
    return %c0_i32, %c0_i32_0 : i32, i32
  }
  func.func @transform_6(%arg0: i32, %arg1: i32) -> (i32, i32) {
    %c0_i32 = arith.constant 0 : i32
    %c0_i32_0 = arith.constant 0 : i32
    %c0_i32_1 = arith.constant 0 : i32
    return %c0_i32, %c0_i32_0 : i32, i32
  }
  func.func @transform_7(%arg0: i32, %arg1: i32) -> (i32, i32) {
    %c0_i32 = arith.constant 0 : i32
    %c0_i32_0 = arith.constant 0 : i32
    %c0_i32_1 = arith.constant 0 : i32
    return %c0_i32, %c0_i32_0 : i32, i32
  }
  func.func @transform_8(%arg0: i32, %arg1: i32) -> (i32, i32) {
    %c0_i32 = arith.constant 0 : i32
    %c0_i32_0 = arith.constant 0 : i32
    %c0_i32_1 = arith.constant 0 : i32
    return %c0_i32, %c0_i32_0 : i32, i32
  }
  func.func @transform_9(%arg0: i32, %arg1: i32) -> (i32, i32) {
    %c0_i32 = arith.constant 0 : i32
    %c0_i32_0 = arith.constant 0 : i32
    %c0_i32_1 = arith.constant 0 : i32
    return %c0_i32, %c0_i32_0 : i32, i32
  }
  func.func @transform_10(%arg0: i32, %arg1: i32) -> (i32, i32) {
    %c0_i32 = arith.constant 0 : i32
    %c0_i32_0 = arith.constant 0 : i32
    %c0_i32_1 = arith.constant 0 : i32
    return %c0_i32, %c0_i32_0 : i32, i32
  }
  func.func @transform_11(%arg0: i32, %arg1: i32) -> (i32, i32) {
    %c0_i32 = arith.constant 0 : i32
    %c0_i32_0 = arith.constant 0 : i32
    %c0_i32_1 = arith.constant 0 : i32
    return %c0_i32, %c0_i32_0 : i32, i32
  }
  func.func @transform_12(%arg0: i32, %arg1: i32) -> (i32, i32) {
    %c0_i32 = arith.constant 0 : i32
    %c0_i32_0 = arith.constant 0 : i32
    %c0_i32_1 = arith.constant 0 : i32
    return %c0_i32, %c0_i32_0 : i32, i32
  }
  func.func @transform_13(%arg0: i32, %arg1: i32) -> (i32, i32) {
    %c0_i32 = arith.constant 0 : i32
    %c0_i32_0 = arith.constant 0 : i32
    %c0_i32_1 = arith.constant 0 : i32
    return %c0_i32, %c0_i32_0 : i32, i32
  }
  func.func @transform_14(%arg0: i32, %arg1: i32) -> (i32, i32, i32) {
    %c0_i32 = arith.constant 0 : i32
    %c0_i32_0 = arith.constant 0 : i32
    return %arg0, %arg1, %c0_i32 : i32, i32, i32
  }
}

</mosaic_0001>

<llo_original>
// kernel: tpu_custom_call.1
$region0: #{tpu_custom_call.1}
  #allocation0 [shape = 'u32[]', space=smem, size = 0x4, offset = 0x4, fixed_abs, tag = 'smem constant byte address 0x4 - core index']
  #allocation1 [shape = 'u32[72,128]{1,0:T(1,128)}', space=vmem, size = 0x9000, scoped, tag = 'internal scratch']
  %s0 = inlined_call_operand.hbm [shape: f32[2,16,128], index: 0, kind: input, shape index: {}]
  %s1 = inlined_call_operand.hbm [shape: f32[2,16,128], index: 1, kind: input, shape index: {}]
  %s2 = inlined_call_operand.hbm [shape: s32[2,16,16], index: 2, kind: input, shape index: {}]
  %s3 = inlined_call_operand.vmem [shape: f32[1,128], index: 3, kind: input, shape index: {}]
  %s4 = inlined_call_operand.hbm [shape: f32[1,128], index: 4, kind: input, shape index: {}]
  %s5 = inlined_call_operand.hbm [shape: f32[128,384], index: 5, kind: input, shape index: {}]
  %s6 = inlined_call_operand.hbm [shape: f32[128,128], index: 6, kind: input, shape index: {}]
  %s7 = inlined_call_operand.vmem [shape: f32[1,128], index: 7, kind: input, shape index: {}]
  %s8 = inlined_call_operand.vmem [shape: f32[1,128], index: 8, kind: input, shape index: {}]
  %s9 = inlined_call_operand.vmem [shape: f32[1,128], index: 9, kind: input, shape index: {}]
  %s10 = inlined_call_operand.hbm [shape: f32[128,256], index: 10, kind: input, shape index: {}]
  %s11 = inlined_call_operand.vmem [shape: f32[1,256], index: 11, kind: input, shape index: {}]
  %s12 = inlined_call_operand.hbm [shape: f32[256,128], index: 12, kind: input, shape index: {}]
  %s13 = inlined_call_operand.vmem [shape: f32[1,128], index: 13, kind: input, shape index: {}]
  %s14 = inlined_call_operand.hbm [shape: f32[2,16,128], index: 14, kind: output, shape index: {}]
  %s15 = sld [smem:[#allocation0]]
  $region121: #{tpu_custom_call.1} parent=0
    _
  %s17 = ssub.s32 1, %s15
  %s18 = scalar_select 0, %s17, %s15
  $region1: #{tpu_custom_call.1} parent=0
    #allocation2 [shape = 'u8[16384]{0}', space=vmem, size = 0x4000, scoped, tag = 'input window, operand 0']
    #allocation3 [shape = 's32[2]{0}', space=sflag, size = 0x8, scoped, tag = 'scoped memory for tpu_custom_call.1']
    #allocation4 [shape = 's32[2]{0}', space=sflag, size = 0x8, scoped, tag = 'scoped memory for tpu_custom_call.1']
    #allocation5 [shape = 'u8[16384]{0}', space=vmem, size = 0x4000, scoped, tag = 'input window, operand 1']
    #allocation6 [shape = 's32[2]{0}', space=sflag, size = 0x8, scoped, tag = 'scoped memory for tpu_custom_call.1']
    #allocation7 [shape = 'u8[16384]{0}', space=vmem, size = 0x4000, scoped, tag = 'input window, operand 2']
    #allocation8 [shape = 'u8[512]{0}', space=vmem, size = 0x400, scoped, tag = 'input window, operand 4, single buffered']
    #allocation9 [shape = 's32[1]{0}', space=sflag, size = 0x4, scoped, tag = 'scoped memory for tpu_custom_call.1']
    #allocation10 [shape = 'u8[196608]{0}', space=vmem, size = 0x30000, scoped, tag = 'input window, operand 5, single buffered']
    #allocation11 [shape = 'u8[65536]{0}', space=vmem, size = 0x10000, scoped, tag = 'input window, operand 6, single buffered']
    #allocation12 [shape = 's32[1]{0}', space=sflag, size = 0x4, scoped, tag = 'scoped memory for tpu_custom_call.1']
    #allocation13 [shape = 'u8[131072]{0}', space=vmem, size = 0x20000, scoped, tag = 'input window, operand 10, single buffered']
    #allocation14 [shape = 'u8[131072]{0}', space=vmem, size = 0x20000, scoped, tag = 'input window, operand 12, single buffered']
    #allocation15 [shape = 's32[1]{0}', space=sflag, size = 0x4, scoped, tag = 'scoped memory for tpu_custom_call.1']
    #allocation16 [shape = 'u8[16384]{0}', space=vmem, size = 0x4000, scoped, tag = 'output window, operand 0']
    %19 = vsyncpa [#allocation3], 0
    %s20 = scalar_lea.sflag [#allocation3], 1
    %21 = vsyncpa %s20, 0
    %22 = vsyncpa [#allocation6], 0
    %s23 = scalar_lea.sflag [#allocation6], 1
    %24 = vsyncpa %s23, 0
    %25 = vsyncpa [#allocation9], 0
    %26 = vsyncpa [#allocation12], 0
    %27 = vsyncpa [#allocation15], 0
    %28 = vsyncpa [#allocation4], 0
    %s29 = scalar_lea.sflag [#allocation4], 1
    %30 = vsyncpa %s29, 0
    loop: start=0, step=1, limit=4
    $region2: #{tpu_custom_call.1} parent=1 // loop_pre_header
      _
    $region3: #{tpu_custom_call.1} parent=1 // loop_header
      %s32 = sphi 0, %s36
      %p33 = scmp.ge.s32.totalorder %s32, 4
      %s39 = sphi 0, %s51
      %s40 = sphi 0, %s47
      %s41 = sphi 0, %s39
      %s42 = sphi 0, %s40
      %s43 = sphi 0, %s41
      %s44 = sphi 0, %s42
      %s56 = sphi 0, %s58
      %s59 = sphi 0, %s56
      %s60 = sphi 0, %s59
      %s76 = sphi 0, %s60
      %s82 = sphi 0, %s84
      %s85 = sphi 0, %s82
      %s86 = sphi 0, %s85
      %s102 = sphi 0, %s86
      %s110 = sphi 0, %s112
      %s113 = sphi 0, %s110
      %s114 = sphi 0, %s113
      %s130 = sphi 0, %s114
      %s134 = sphi 0, %s134
      %s136 = sphi 0, %s134
      %s137 = sphi 0, %s136
      %s151 = sphi 0, %s137
      %s155 = sphi 0, %s155
      %s157 = sphi 0, %s155
      %s158 = sphi 0, %s157
      %s172 = sphi 0, %s158
      %s176 = sphi 0, %s176
      %s178 = sphi 0, %s176
      %s179 = sphi 0, %s178
      %s193 = sphi 0, %s179
      %s197 = sphi 0, %s197
      %s199 = sphi 0, %s197
      %s200 = sphi 0, %s199
      %s214 = sphi 0, %s200
      %s218 = sphi 0, %s218
      %s220 = sphi 0, %s218
      %s221 = sphi 0, %s220
      %s235 = sphi 0, %s221
      %s239 = sphi 0, %s239
      %s241 = sphi 0, %s239
      %s242 = sphi 0, %s241
      %s256 = sphi 0, %s242
      %s260 = sphi 0, %s260
      %s262 = sphi 0, %s260
      %s263 = sphi 0, %s262
      %s277 = sphi 0, %s263
      %s281 = sphi 0, %s281
      %s283 = sphi 0, %s281
      %s284 = sphi 0, %s283
      %s298 = sphi 0, %s284
      %s302 = sphi 0, %s302
      %s304 = sphi 0, %s302
      %s305 = sphi 0, %s304
      %s319 = sphi 0, %s305
      %s323 = sphi 0, %s323
      %s325 = sphi 0, %s323
      %s326 = sphi 0, %s325
      %s340 = sphi 0, %s326
      %s344 = sphi 0, %s344
      %s346 = sphi 0, %s344
      %s347 = sphi 0, %s346
      %s361 = sphi 0, %s347
      %s369 = sphi 0, %s371
      %s372 = sphi 0, %s369
      %s373 = sphi 0, %s372
      %s389 = sphi 0, %s373
    $region4: #{tpu_custom_call.1} parent=1 // loop_header_branch
      %35 = sbr.rel (%p33) target = $region8
    $region5: #{tpu_custom_call.1} parent=1 // loop_body
      %s37 = ssub.s32 %s32, 1
      %s38 = ssub.s32 %s32, 2
      %s45 = sadd.s32 1, %s40
      %p46 = scmp.ge.s32.totalorder %s45, 1
      %s47 = scalar_select %p46, 0, %s45
      %s48 = sadd.s32 1, %s39
      %s49 = scalar_select %p46, %s48, %s39
      %p50 = scmp.ge.s32.totalorder %s49, 2
      %s51 = scalar_select %p50, 0, %s49
      %s52 = ssub.s32 %s39, %s51
      %s53 = ssub.s32 %s40, %s47
      %s54 = sor.u32 %s52, %s53
      %p55 = scmp.eq.s32.totalorder %s54, 0
      %s57 = sadd.s32 %s56, 1
      %s58 = scalar_select %p55, %s56, %s57
      %p61 = pneg %p55
      %p62 = scmp.eq.s32.totalorder %s32, 1
      %p63 = por %p61, %p62
      %p64 = scmp.ne.s32.totalorder %s56, %s59
      %p65 = scmp.eq.s32.totalorder %s32, 0
      %p66 = por %p64, %p65
      %p67 = scmp.ne.s32.totalorder %s56, %s59
      %p68 = scmp.eq.s32.totalorder %s37, 1
      %p69 = por %p67, %p68
      %p70 = scmp.ne.s32.totalorder %s59, %s60
      %p71 = scmp.eq.s32.totalorder %s37, 0
      %p72 = por %p70, %p71
      %p73 = scmp.ne.s32.totalorder %s59, %s60
      %p74 = scmp.eq.s32.totalorder %s38, 1
      %p75 = por %p73, %p74
      %p77 = scmp.ne.s32.totalorder %s60, %s76
      %p78 = scmp.eq.s32.totalorder %s38, 0
      %p79 = por %p77, %p78
      %s80 = ssub.s32 %s39, %s51
      %p81 = scmp.eq.s32.totalorder %s80, 0
      %s83 = sadd.s32 %s82, 1
      %s84 = scalar_select %p81, %s82, %s83
      %p87 = pneg %p81
      %p88 = scmp.eq.s32.totalorder %s32, 1
      %p89 = por %p87, %p88
      %p90 = scmp.ne.s32.totalorder %s82, %s85
      %p91 = scmp.eq.s32.totalorder %s32, 0
      %p92 = por %p90, %p91
      %p93 = scmp.ne.s32.totalorder %s82, %s85
      %p94 = scmp.eq.s32.totalorder %s37, 1
      %p95 = por %p93, %p94
      %p96 = scmp.ne.s32.totalorder %s85, %s86
      %p97 = scmp.eq.s32.totalorder %s37, 0
      %p98 = por %p96, %p97
      %p99 = scmp.ne.s32.totalorder %s85, %s86
      %p100 = scmp.eq.s32.totalorder %s38, 1
      %p101 = por %p99, %p100
      %p103 = scmp.ne.s32.totalorder %s86, %s102
      %p104 = scmp.eq.s32.totalorder %s38, 0
      %p105 = por %p103, %p104
      %s106 = ssub.s32 %s39, %s51
      %s107 = ssub.s32 %s40, %s47
      %s108 = sor.u32 %s106, %s107
      %p109 = scmp.eq.s32.totalorder %s108, 0
      %s111 = sadd.s32 %s110, 1
      %s112 = scalar_select %p109, %s110, %s111
      %p115 = pneg %p109
      %p116 = scmp.eq.s32.totalorder %s32, 1
      %p117 = por %p115, %p116
      %p118 = scmp.ne.s32.totalorder %s110, %s113
      %p119 = scmp.eq.s32.totalorder %s32, 0
      %p120 = por %p118, %p119
      %p121 = scmp.ne.s32.totalorder %s110, %s113
      %p122 = scmp.eq.s32.totalorder %s37, 1
      %p123 = por %p121, %p122
      %p124 = scmp.ne.s32.totalorder %s113, %s114
      %p125 = scmp.eq.s32.totalorder %s37, 0
      %p126 = por %p124, %p125
      %p127 = scmp.ne.s32.totalorder %s113, %s114
      %p128 = scmp.eq.s32.totalorder %s38, 1
      %p129 = por %p127, %p128
      %p131 = scmp.ne.s32.totalorder %s114, %s130
      %p132 = scmp.eq.s32.totalorder %s38, 0
      %p133 = por %p131, %p132
      %s135 = sadd.s32 %s134, 1
      %p138 = scmp.eq.s32.totalorder %s32, 1
      %p139 = scmp.ne.s32.totalorder %s134, %s136
      %p140 = scmp.eq.s32.totalorder %s32, 0
      %p141 = por %p139, %p140
      %p142 = scmp.ne.s32.totalorder %s134, %s136
      %p143 = scmp.eq.s32.totalorder %s37, 1
      %p144 = por %p142, %p143
      %p145 = scmp.ne.s32.totalorder %s136, %s137
      %p146 = scmp.eq.s32.totalorder %s37, 0
      %p147 = por %p145, %p146
      %p148 = scmp.ne.s32.totalorder %s136, %s137
      %p149 = scmp.eq.s32.totalorder %s38, 1
      %p150 = por %p148, %p149
      %p152 = scmp.ne.s32.totalorder %s137, %s151
      %p153 = scmp.eq.s32.totalorder %s38, 0
      %p154 = por %p152, %p153
      %s156 = sadd.s32 %s155, 1
      %p159 = scmp.eq.s32.totalorder %s32, 1
      %p160 = scmp.ne.s32.totalorder %s155, %s157
      %p161 = scmp.eq.s32.totalorder %s32, 0
      %p162 = por %p160, %p161
      %p163 = scmp.ne.s32.totalorder %s155, %s157
      %p164 = scmp.eq.s32.totalorder %s37, 1
      %p165 = por %p163, %p164
      %p166 = scmp.ne.s32.totalorder %s157, %s158
      %p167 = scmp.eq.s32.totalorder %s37, 0
      %p168 = por %p166, %p167
      %p169 = scmp.ne.s32.totalorder %s157, %s158
      %p170 = scmp.eq.s32.totalorder %s38, 1
      %p171 = por %p169, %p170
      %p173 = scmp.ne.s32.totalorder %s158, %s172
      %p174 = scmp.eq.s32.totalorder %s38, 0
      %p175 = por %p173, %p174
      %s177 = sadd.s32 %s176, 1
      %p180 = scmp.eq.s32.totalorder %s32, 1
      %p181 = scmp.ne.s32.totalorder %s176, %s178
      %p182 = scmp.eq.s32.totalorder %s32, 0
      %p183 = por %p181, %p182
      %p184 = scmp.ne.s32.totalorder %s176, %s178
      %p185 = scmp.eq.s32.totalorder %s37, 1
      %p186 = por %p184, %p185
      %p187 = scmp.ne.s32.totalorder %s178, %s179
      %p188 = scmp.eq.s32.totalorder %s37, 0
      %p189 = por %p187, %p188
      %p190 = scmp.ne.s32.totalorder %s178, %s179
      %p191 = scmp.eq.s32.totalorder %s38, 1
      %p192 = por %p190, %p191
      %p194 = scmp.ne.s32.totalorder %s179, %s193
      %p195 = scmp.eq.s32.totalorder %s38, 0
      %p196 = por %p194, %p195
      %s198 = sadd.s32 %s197, 1
      %p201 = scmp.eq.s32.totalorder %s32, 1
      %p202 = scmp.ne.s32.totalorder %s197, %s199
      %p203 = scmp.eq.s32.totalorder %s32, 0
      %p204 = por %p202, %p203
      %p205 = scmp.ne.s32.totalorder %s197, %s199
      %p206 = scmp.eq.s32.totalorder %s37, 1
      %p207 = por %p205, %p206
      %p208 = scmp.ne.s32.totalorder %s199, %s200
      %p209 = scmp.eq.s32.totalorder %s37, 0
      %p210 = por %p208, %p209
      %p211 = scmp.ne.s32.totalorder %s199, %s200
      %p212 = scmp.eq.s32.totalorder %s38, 1
      %p213 = por %p211, %p212
      %p215 = scmp.ne.s32.totalorder %s200, %s214
      %p216 = scmp.eq.s32.totalorder %s38, 0
      %p217 = por %p215, %p216
      %s219 = sadd.s32 %s218, 1
      %p222 = scmp.eq.s32.totalorder %s32, 1
      %p223 = scmp.ne.s32.totalorder %s218, %s220
      %p224 = scmp.eq.s32.totalorder %s32, 0
      %p225 = por %p223, %p224
      %p226 = scmp.ne.s32.totalorder %s218, %s220
      %p227 = scmp.eq.s32.totalorder %s37, 1
      %p228 = por %p226, %p227
      %p229 = scmp.ne.s32.totalorder %s220, %s221
      %p230 = scmp.eq.s32.totalorder %s37, 0
      %p231 = por %p229, %p230
      %p232 = scmp.ne.s32.totalorder %s220, %s221
      %p233 = scmp.eq.s32.totalorder %s38, 1
      %p234 = por %p232, %p233
      %p236 = scmp.ne.s32.totalorder %s221, %s235
      %p237 = scmp.eq.s32.totalorder %s38, 0
      %p238 = por %p236, %p237
      %s240 = sadd.s32 %s239, 1
      %p243 = scmp.eq.s32.totalorder %s32, 1
      %p244 = scmp.ne.s32.totalorder %s239, %s241
      %p245 = scmp.eq.s32.totalorder %s32, 0
      %p246 = por %p244, %p245
      %p247 = scmp.ne.s32.totalorder %s239, %s241
      %p248 = scmp.eq.s32.totalorder %s37, 1
      %p249 = por %p247, %p248
      %p250 = scmp.ne.s32.totalorder %s241, %s242
      %p251 = scmp.eq.s32.totalorder %s37, 0
      %p252 = por %p250, %p251
      %p253 = scmp.ne.s32.totalorder %s241, %s242
      %p254 = scmp.eq.s32.totalorder %s38, 1
      %p255 = por %p253, %p254
      %p257 = scmp.ne.s32.totalorder %s242, %s256
      %p258 = scmp.eq.s32.totalorder %s38, 0
      %p259 = por %p257, %p258
      %s261 = sadd.s32 %s260, 1
      %p264 = scmp.eq.s32.totalorder %s32, 1
      %p265 = scmp.ne.s32.totalorder %s260, %s262
      %p266 = scmp.eq.s32.totalorder %s32, 0
      %p267 = por %p265, %p266
      %p268 = scmp.ne.s32.totalorder %s260, %s262
      %p269 = scmp.eq.s32.totalorder %s37, 1
      %p270 = por %p268, %p269
      %p271 = scmp.ne.s32.totalorder %s262, %s263
      %p272 = scmp.eq.s32.totalorder %s37, 0
      %p273 = por %p271, %p272
      %p274 = scmp.ne.s32.totalorder %s262, %s263
      %p275 = scmp.eq.s32.totalorder %s38, 1
      %p276 = por %p274, %p275
      %p278 = scmp.ne.s32.totalorder %s263, %s277
      %p279 = scmp.eq.s32.totalorder %s38, 0
      %p280 = por %p278, %p279
      %s282 = sadd.s32 %s281, 1
      %p285 = scmp.eq.s32.totalorder %s32, 1
      %p286 = scmp.ne.s32.totalorder %s281, %s283
      %p287 = scmp.eq.s32.totalorder %s32, 0
      %p288 = por %p286, %p287
      %p289 = scmp.ne.s32.totalorder %s281, %s283
      %p290 = scmp.eq.s32.totalorder %s37, 1
      %p291 = por %p289, %p290
      %p292 = scmp.ne.s32.totalorder %s283, %s284
      %p293 = scmp.eq.s32.totalorder %s37, 0
      %p294 = por %p292, %p293
      %p295 = scmp.ne.s32.totalorder %s283, %s284
      %p296 = scmp.eq.s32.totalorder %s38, 1
      %p297 = por %p295, %p296
      %p299 = scmp.ne.s32.totalorder %s284, %s298
      %p300 = scmp.eq.s32.totalorder %s38, 0
      %p301 = por %p299, %p300
      %s303 = sadd.s32 %s302, 1
      %p306 = scmp.eq.s32.totalorder %s32, 1
      %p307 = scmp.ne.s32.totalorder %s302, %s304
      %p308 = scmp.eq.s32.totalorder %s32, 0
      %p309 = por %p307, %p308
      %p310 = scmp.ne.s32.totalorder %s302, %s304
      %p311 = scmp.eq.s32.totalorder %s37, 1
      %p312 = por %p310, %p311
      %p313 = scmp.ne.s32.totalorder %s304, %s305
      %p314 = scmp.eq.s32.totalorder %s37, 0
      %p315 = por %p313, %p314
      %p316 = scmp.ne.s32.totalorder %s304, %s305
      %p317 = scmp.eq.s32.totalorder %s38, 1
      %p318 = por %p316, %p317
      %p320 = scmp.ne.s32.totalorder %s305, %s319
      %p321 = scmp.eq.s32.totalorder %s38, 0
      %p322 = por %p320, %p321
      %s324 = sadd.s32 %s323, 1
      %p327 = scmp.eq.s32.totalorder %s32, 1
      %p328 = scmp.ne.s32.totalorder %s323, %s325
      %p329 = scmp.eq.s32.totalorder %s32, 0
      %p330 = por %p328, %p329
      %p331 = scmp.ne.s32.totalorder %s323, %s325
      %p332 = scmp.eq.s32.totalorder %s37, 1
      %p333 = por %p331, %p332
      %p334 = scmp.ne.s32.totalorder %s325, %s326
      %p335 = scmp.eq.s32.totalorder %s37, 0
      %p336 = por %p334, %p335
      %p337 = scmp.ne.s32.totalorder %s325, %s326
      %p338 = scmp.eq.s32.totalorder %s38, 1
      %p339 = por %p337, %p338
      %p341 = scmp.ne.s32.totalorder %s326, %s340
      %p342 = scmp.eq.s32.totalorder %s38, 0
      %p343 = por %p341, %p342
      %s345 = sadd.s32 %s344, 1
      %p348 = scmp.eq.s32.totalorder %s32, 1
      %p349 = scmp.ne.s32.totalorder %s344, %s346
      %p350 = scmp.eq.s32.totalorder %s32, 0
      %p351 = por %p349, %p350
      %p352 = scmp.ne.s32.totalorder %s344, %s346
      %p353 = scmp.eq.s32.totalorder %s37, 1
      %p354 = por %p352, %p353
      %p355 = scmp.ne.s32.totalorder %s346, %s347
      %p356 = scmp.eq.s32.totalorder %s37, 0
      %p357 = por %p355, %p356
      %p358 = scmp.ne.s32.totalorder %s346, %s347
      %p359 = scmp.eq.s32.totalorder %s38, 1
      %p360 = por %p358, %p359
      %p362 = scmp.ne.s32.totalorder %s347, %s361
      %p363 = scmp.eq.s32.totalorder %s38, 0
      %p364 = por %p362, %p363
      %s365 = ssub.s32 %s39, %s51
      %s366 = ssub.s32 %s40, %s47
      %s367 = sor.u32 %s365, %s366
      %p368 = scmp.eq.s32.totalorder %s367, 0
      %s370 = sadd.s32 %s369, 1
      %s371 = scalar_select %p368, %s369, %s370
      %p374 = pneg %p368
      %p375 = scmp.eq.s32.totalorder %s32, 1
      %p376 = por %p374, %p375
      %p377 = scmp.ne.s32.totalorder %s369, %s372
      %p378 = scmp.eq.s32.totalorder %s32, 0
      %p379 = por %p377, %p378
      %p380 = scmp.ne.s32.totalorder %s369, %s372
      %p381 = scmp.eq.s32.totalorder %s37, 1
      %p382 = por %p380, %p381
      %p383 = scmp.ne.s32.totalorder %s372, %s373
      %p384 = scmp.eq.s32.totalorder %s37, 0
      %p385 = por %p383, %p384
      %p386 = scmp.ne.s32.totalorder %s372, %s373
      %p387 = scmp.eq.s32.totalorder %s38, 1
      %p388 = por %p386, %p387
      %p390 = scmp.ne.s32.totalorder %s373, %s389
      %p391 = scmp.eq.s32.totalorder %s38, 0
      %p392 = por %p390, %p391
      %p393 = scmp.le.s32.totalorder 1, %s32
      %p394 = scmp.lt.s32.totalorder %s32, 3
      %p395 = pnand %p393, %p394
      %p396 = pneg %p395
      // Predicated region
      $region9: #{tpu_custom_call.1} parent=5 // pred_check
        _
      $region10: #{tpu_custom_call.1} parent=5 // pred_check_branch
        %398 = sbr.rel (%p395) target = $region12
      $region11: #{tpu_custom_call.1} parent=5 // pred_region
        %s399 = ssub.s32 %s32, 1
        // Predicated region
        $region13: #{tpu_custom_call.1} parent=11 // pred_check
          %p400 = pneg %p147
        $region14: #{tpu_custom_call.1} parent=11 // pred_check_branch
          %402 = sbr.rel (%p400) target = $region16
        $region15: #{tpu_custom_call.1} parent=11 // pred_region
          _
        $region16: #{tpu_custom_call.1} parent=11 // pred_fallthru
          _
        // Predicated region
        $region17: #{tpu_custom_call.1} parent=11 // pred_check
          %p403 = pneg %p168
        $region18: #{tpu_custom_call.1} parent=11 // pred_check_branch
          %405 = sbr.rel (%p403) target = $region20
        $region19: #{tpu_custom_call.1} parent=11 // pred_region
          %407 = vsyncadd [#allocation9], 0
          %s409 = sshll.u32 %s4, 4
          %s410 = int_to_ptr.hbm [resolvable:$true] %s409
          %s411 = sshll.u32 [#allocation8], 4
          %s412 = int_to_ptr.vmem [resolvable:$true] %s411
          %414 = dma.hbm_to_vmem [thread:$0]  %s410, 16, %s412, [#allocation9]
        $region20: #{tpu_custom_call.1} parent=11 // pred_fallthru
          _
        // Predicated region
        $region21: #{tpu_custom_call.1} parent=11 // pred_check
          %p415 = pneg %p189
        $region22: #{tpu_custom_call.1} parent=11 // pred_check_branch
          %417 = sbr.rel (%p415) target = $region24
        $region23: #{tpu_custom_call.1} parent=11 // pred_region
          %419 = vsyncadd [#allocation9], 0
          %s420 = sshll.u32 %s5, 4
          %s421 = int_to_ptr.hbm [resolvable:$true] %s420
          %s422 = sshll.u32 [#allocation10], 4
          %s423 = int_to_ptr.vmem [resolvable:$true] %s422
          %428 = dma.hbm_to_vmem [thread:$0]  %s421, 6144, %s423, [#allocation9], 384, 384, 24
        $region24: #{tpu_custom_call.1} parent=11 // pred_fallthru
          _
        // Predicated region
        $region25: #{tpu_custom_call.1} parent=11 // pred_check
          %p429 = pneg %p210
        $region26: #{tpu_custom_call.1} parent=11 // pred_check_branch
          %431 = sbr.rel (%p429) target = $region28
        $region27: #{tpu_custom_call.1} parent=11 // pred_region
          %433 = vsyncadd [#allocation12], 0
          %s434 = sshll.u32 %s6, 4
          %s435 = int_to_ptr.hbm [resolvable:$true] %s434
          %s436 = sshll.u32 [#allocation11], 4
          %s437 = int_to_ptr.vmem [resolvable:$true] %s436
          %442 = dma.hbm_to_vmem [thread:$0]  %s435, 2048, %s437, [#allocation12], 128, 128, 8
        $region28: #{tpu_custom_call.1} parent=11 // pred_fallthru
          _
        // Predicated region
        $region29: #{tpu_custom_call.1} parent=11 // pred_check
          %p443 = pneg %p231
        $region30: #{tpu_custom_call.1} parent=11 // pred_check_branch
          %445 = sbr.rel (%p443) target = $region32
        $region31: #{tpu_custom_call.1} parent=11 // pred_region
          _
        $region32: #{tpu_custom_call.1} parent=11 // pred_fallthru
          _
        // Predicated region
        $region33: #{tpu_custom_call.1} parent=11 // pred_check
          %p446 = pneg %p252
        $region34: #{tpu_custom_call.1} parent=11 // pred_check_branch
          %448 = sbr.rel (%p446) target = $region36
        $region35: #{tpu_custom_call.1} parent=11 // pred_region
          _
        $region36: #{tpu_custom_call.1} parent=11 // pred_fallthru
          _
        // Predicated region
        $region37: #{tpu_custom_call.1} parent=11 // pred_check
          %p449 = pneg %p273
        $region38: #{tpu_custom_call.1} parent=11 // pred_check_branch
          %451 = sbr.rel (%p449) target = $region40
        $region39: #{tpu_custom_call.1} parent=11 // pred_region
          _
        $region40: #{tpu_custom_call.1} parent=11 // pred_fallthru
          _
        // Predicated region
        $region41: #{tpu_custom_call.1} parent=11 // pred_check
          %p452 = pneg %p294
        $region42: #{tpu_custom_call.1} parent=11 // pred_check_branch
          %454 = sbr.rel (%p452) target = $region44
        $region43: #{tpu_custom_call.1} parent=11 // pred_region
          %456 = vsyncadd [#allocation12], 0
          %s457 = sshll.u32 %s10, 4
          %s458 = int_to_ptr.hbm [resolvable:$true] %s457
          %s459 = sshll.u32 [#allocation13], 4
          %s460 = int_to_ptr.vmem [resolvable:$true] %s459
          %465 = dma.hbm_to_vmem [thread:$0]  %s458, 4096, %s460, [#allocation12], 256, 256, 16
        $region44: #{tpu_custom_call.1} parent=11 // pred_fallthru
          _
        // Predicated region
        $region45: #{tpu_custom_call.1} parent=11 // pred_check
          %p466 = pneg %p315
        $region46: #{tpu_custom_call.1} parent=11 // pred_check_branch
          %468 = sbr.rel (%p466) target = $region48
        $region47: #{tpu_custom_call.1} parent=11 // pred_region
          _
        $region48: #{tpu_custom_call.1} parent=11 // pred_fallthru
          _
        // Predicated region
        $region49: #{tpu_custom_call.1} parent=11 // pred_check
          %p469 = pneg %p336
        $region50: #{tpu_custom_call.1} parent=11 // pred_check_branch
          %471 = sbr.rel (%p469) target = $region52
        $region51: #{tpu_custom_call.1} parent=11 // pred_region
          %473 = vsyncadd [#allocation15], 0
          %s474 = sshll.u32 %s12, 4
          %s475 = int_to_ptr.hbm [resolvable:$true] %s474
          %s476 = sshll.u32 [#allocation14], 4
          %s477 = int_to_ptr.vmem [resolvable:$true] %s476
          %482 = dma.hbm_to_vmem [thread:$0]  %s475, 4096, %s477, [#allocation15], 128, 128, 8
        $region52: #{tpu_custom_call.1} parent=11 // pred_fallthru
          _
        // Predicated region
        $region53: #{tpu_custom_call.1} parent=11 // pred_check
          %p483 = pneg %p357
        $region54: #{tpu_custom_call.1} parent=11 // pred_check_branch
          %485 = sbr.rel (%p483) target = $region56
        $region55: #{tpu_custom_call.1} parent=11 // pred_region
          _
        $region56: #{tpu_custom_call.1} parent=11 // pred_fallthru
          _
      $region12: #{tpu_custom_call.1} parent=5 // pred_fallthru
        _
      %p486 = scmp.lt.s32.totalorder %s32, 2
      // Predicated region
      $region57: #{tpu_custom_call.1} parent=5 // pred_check
        %p487 = pneg %p486
      $region58: #{tpu_custom_call.1} parent=5 // pred_check_branch
        %489 = sbr.rel (%p487) target = $region60
      $region59: #{tpu_custom_call.1} parent=5 // pred_region
        // Predicated region
        $region61: #{tpu_custom_call.1} parent=59 // pred_check
          %p490 = pneg %p66
        $region62: #{tpu_custom_call.1} parent=59 // pred_check_branch
          %492 = sbr.rel (%p490) target = $region64
        $region63: #{tpu_custom_call.1} parent=59 // pred_region
          %s493 = sand.u32 %s56, 1
          %s494 = scalar_lea.sflag [#allocation3], %s493
          %s495 = sand.u32 %s56, 1
          %s496 = smul.addr %s495, 16
          %s497 = scalar_lea.vmem [#allocation2], %s496
          %s498 = smul.u32 2, %s40
          %500 = vsyncadd %s494, 0
          %s501 = smul.addr %s39, 2
          %s502 = sadd.s32 %s498, %s501
          %s503 = smul.addr %s502, 8
          %s504 = scalar_lea.hbm %s0, %s503
          %s505 = sshll.u32 %s504, 4
          %s506 = int_to_ptr.hbm [resolvable:$true] %s505
          %s507 = sshll.u32 %s497, 4
          %s508 = int_to_ptr.vmem [resolvable:$true] %s507
          %513 = dma.hbm_to_vmem [thread:$0]  %s506, 256, %s508, %s494, 128, 128, 8
        $region64: #{tpu_custom_call.1} parent=59 // pred_fallthru
          _
        // Predicated region
        $region65: #{tpu_custom_call.1} parent=59 // pred_check
          %p514 = pneg %p92
        $region66: #{tpu_custom_call.1} parent=59 // pred_check_branch
          %516 = sbr.rel (%p514) target = $region68
        $region67: #{tpu_custom_call.1} parent=59 // pred_region
          %s517 = sand.u32 %s32, 1
          %s518 = scalar_lea.sflag [#allocation6], %s517
          %s519 = sand.u32 %s82, 1
          %s520 = smul.addr %s519, 16
          %s521 = scalar_lea.vmem [#allocation5], %s520
          %523 = vsyncadd %s518, 0
          %s524 = smul.addr %s39, 2
          %s525 = smul.addr %s524, 8
          %s526 = scalar_lea.hbm %s1, %s525
          %s527 = sshll.u32 %s526, 4
          %s528 = int_to_ptr.hbm [resolvable:$true] %s527
          %s529 = sshll.u32 %s521, 4
          %s530 = int_to_ptr.vmem [resolvable:$true] %s529
          %535 = dma.hbm_to_vmem [thread:$0]  %s528, 256, %s530, %s518, 128, 128, 8
        $region68: #{tpu_custom_call.1} parent=59 // pred_fallthru
          _
        // Predicated region
        $region69: #{tpu_custom_call.1} parent=59 // pred_check
          %p536 = pneg %p120
        $region70: #{tpu_custom_call.1} parent=59 // pred_check_branch
          %538 = sbr.rel (%p536) target = $region72
        $region71: #{tpu_custom_call.1} parent=59 // pred_region
          %s539 = sand.u32 %s32, 1
          %s540 = scalar_lea.sflag [#allocation6], %s539
          %s541 = sand.u32 %s110, 1
          %s542 = smul.addr %s541, 16
          %s543 = scalar_lea.vmem [#allocation7], %s542
          %s544 = smul.u32 2, %s40
          %546 = vsyncadd %s540, 0
          %s547 = smul.addr %s39, 2
          %s548 = sadd.s32 %s544, %s547
          %s549 = smul.addr %s548, 8
          %s550 = scalar_lea.hbm %s2, %s549
          %s551 = sshll.u32 %s550, 4
          %s552 = int_to_ptr.hbm [resolvable:$true] %s551
          %s553 = sshll.u32 %s543, 4
          %s554 = int_to_ptr.vmem [resolvable:$true] %s553
          %559 = dma.hbm_to_vmem [thread:$0]  %s552, 256, %s554, %s540, 128, 128, 8
        $region72: #{tpu_custom_call.1} parent=59 // pred_fallthru
          _
      $region60: #{tpu_custom_call.1} parent=5 // pred_fallthru
        _
      %p560 = scmp.le.s32.totalorder 1, %s32
      %p561 = scmp.lt.s32.totalorder %s32, 3
      %p562 = pnand %p560, %p561
      %p563 = pneg %p562
      // Predicated region
      $region73: #{tpu_custom_call.1} parent=5 // pred_check
        _
      $region74: #{tpu_custom_call.1} parent=5 // pred_check_branch
        %565 = sbr.rel (%p562) target = $region76
      $region75: #{tpu_custom_call.1} parent=5 // pred_region
        %s566 = ssub.s32 %s32, 1
        %s567 = sand.u32 %s59, 1
        %s568 = scalar_lea.sflag [#allocation3], %s567
        %s569 = sand.u32 %s59, 1
        %s570 = smul.addr %s569, 16
        %s571 = scalar_lea.vmem [#allocation2], %s570
        // Predicated region
        $region77: #{tpu_custom_call.1} parent=75 // pred_check
          %p572 = pneg %p72
        $region78: #{tpu_custom_call.1} parent=75 // pred_check_branch
          %574 = sbr.rel (%p572) target = $region80
        $region79: #{tpu_custom_call.1} parent=75 // pred_region
          %576 = dma.done %s568, 256
        $region80: #{tpu_custom_call.1} parent=75 // pred_fallthru
          _
        %s577 = sand.u32 %s37, 1
        %s578 = scalar_lea.sflag [#allocation6], %s577
        %s579 = sand.u32 %s85, 1
        %s580 = smul.addr %s579, 16
        %s581 = scalar_lea.vmem [#allocation5], %s580
        // Predicated region
        $region81: #{tpu_custom_call.1} parent=75 // pred_check
          %p582 = pneg %p98
        $region82: #{tpu_custom_call.1} parent=75 // pred_check_branch
          %584 = sbr.rel (%p582) target = $region84
        $region83: #{tpu_custom_call.1} parent=75 // pred_region
          %586 = dma.done %s578, 256
        $region84: #{tpu_custom_call.1} parent=75 // pred_fallthru
          _
        %s587 = sand.u32 %s37, 1
        %s588 = scalar_lea.sflag [#allocation6], %s587
        %s589 = sand.u32 %s113, 1
        %s590 = smul.addr %s589, 16
        %s591 = scalar_lea.vmem [#allocation7], %s590
        // Predicated region
        $region85: #{tpu_custom_call.1} parent=75 // pred_check
          %p592 = pneg %p126
        $region86: #{tpu_custom_call.1} parent=75 // pred_check_branch
          %594 = sbr.rel (%p592) target = $region88
        $region87: #{tpu_custom_call.1} parent=75 // pred_region
          %596 = dma.done %s588, 256
        $region88: #{tpu_custom_call.1} parent=75 // pred_fallthru
          _
        // Predicated region
        $region89: #{tpu_custom_call.1} parent=75 // pred_check
          %p597 = pneg %p168
        $region90: #{tpu_custom_call.1} parent=75 // pred_check_branch
          %599 = sbr.rel (%p597) target = $region92
        $region91: #{tpu_custom_call.1} parent=75 // pred_region
          %601 = dma.done [#allocation9], 16
        $region92: #{tpu_custom_call.1} parent=75 // pred_fallthru
          _
        // Predicated region
        $region93: #{tpu_custom_call.1} parent=75 // pred_check
          %p602 = pneg %p189
        $region94: #{tpu_custom_call.1} parent=75 // pred_check_branch
          %604 = sbr.rel (%p602) target = $region96
        $region95: #{tpu_custom_call.1} parent=75 // pred_region
          %606 = dma.done [#allocation9], 6144
        $region96: #{tpu_custom_call.1} parent=75 // pred_fallthru
          _
        // Predicated region
        $region97: #{tpu_custom_call.1} parent=75 // pred_check
          %p607 = pneg %p210
        $region98: #{tpu_custom_call.1} parent=75 // pred_check_branch
          %609 = sbr.rel (%p607) target = $region100
        $region99: #{tpu_custom_call.1} parent=75 // pred_region
          %611 = dma.done [#allocation12], 2048
        $region100: #{tpu_custom_call.1} parent=75 // pred_fallthru
          _
        // Predicated region
        $region101: #{tpu_custom_call.1} parent=75 // pred_check
          %p612 = pneg %p294
        $region102: #{tpu_custom_call.1} parent=75 // pred_check_branch
          %614 = sbr.rel (%p612) target = $region104
        $region103: #{tpu_custom_call.1} parent=75 // pred_region
          %616 = dma.done [#allocation12], 4096
        $region104: #{tpu_custom_call.1} parent=75 // pred_fallthru
          _
        // Predicated region
        $region105: #{tpu_custom_call.1} parent=75 // pred_check
          %p617 = pneg %p336
        $region106: #{tpu_custom_call.1} parent=75 // pred_check_branch
          %619 = sbr.rel (%p617) target = $region108
        $region107: #{tpu_custom_call.1} parent=75 // pred_region
          %621 = dma.done [#allocation15], 4096
        $region108: #{tpu_custom_call.1} parent=75 // pred_fallthru
          _
        %s622 = sand.u32 %s59, 1
        %s623 = scalar_lea.sflag [#allocation3], %s622
        %s624 = sand.u32 %s59, 1
        %s625 = smul.addr %s624, 16
        %s626 = scalar_lea.vmem [#allocation2], %s625
        %p627 = pneg %p72
        %p628 = pneg %p69
        %s629 = sand.u32 %s37, 1
        %s630 = scalar_lea.sflag [#allocation6], %s629
        %s631 = sand.u32 %s85, 1
        %s632 = smul.addr %s631, 16
        %s633 = scalar_lea.vmem [#allocation5], %s632
        %p634 = pneg %p98
        %p635 = pneg %p95
        %s636 = sand.u32 %s37, 1
        %s637 = scalar_lea.sflag [#allocation6], %s636
        %s638 = sand.u32 %s113, 1
        %s639 = smul.addr %s638, 16
        %s640 = scalar_lea.vmem [#allocation7], %s639
        %p641 = pneg %p126
        %p642 = pneg %p123
        %p643 = pneg %p147
        %p644 = pneg %p144
        %p645 = pneg %p168
        %p646 = pneg %p165
        %p647 = pneg %p189
        %p648 = pneg %p186
        %p649 = pneg %p210
        %p650 = pneg %p207
        %p651 = pneg %p231
        %p652 = pneg %p228
        %p653 = pneg %p252
        %p654 = pneg %p249
        %p655 = pneg %p273
        %p656 = pneg %p270
        %p657 = pneg %p294
        %p658 = pneg %p291
        %p659 = pneg %p315
        %p660 = pneg %p312
        %p661 = pneg %p336
        %p662 = pneg %p333
        %p663 = pneg %p357
        %p664 = pneg %p354
        %p665 = pneg %p385
        %p666 = pneg %p382
        %s667 = sand.u32 %s372, 1
        %s668 = scalar_lea.sflag [#allocation4], %s667
        %s669 = sand.u32 %s372, 1
        %s670 = smul.addr %s669, 16
        %s671 = scalar_lea.vmem [#allocation16], %s670
        %s672 = smul.u32 2, %s42
        %s673 = smul.u32 2, %s42
        %s674 = smul.u32 2, %s42
        %v675 = vld [vmem:[%s571] sm:$0xff]
        %v676 = vld [vmem:[%s571 + $0x8] sm:$0xff]
        %v677 = vld [vmem:[%s581] sm:$0xff]
        %v678 = vld [vmem:[%s581 + $0x8] sm:$0xff]
        %v679 = vld [vmem:[%s591] sm:$0xff]
        %v680 = vld [vmem:[%s591 + $0x8] sm:$0xff]
        %vm681 = vcmp.eq.s32.totalorder %v679, 0
        %vm682 = vcmp.eq.s32.totalorder %v680, 0
        %v683 = vld [vmem:[%s3] sm:$0x1]
        %v684 = vld [vmem:[#allocation8] sm:$0x1]
        %685 = vadd.xlane.f32.xlu0 %v675
        %v686 = vpop.xlane.xlu0 %685
        %687 = vadd.xlane.f32.xlu0 %v676
        %v688 = vpop.xlane.xlu0 %687
        %v689 = vrcp.pop 128.0
        %v690 = vmul.f32 128.0, %v689
        %v691 = vsub.f32 1.0, %v690
        %v692 = vmul.f32 %v689, %v691
        %v693 = vadd.f32 %v689, %v692
        %vm694 = vweird.f32 %v689
        %v695 = vsel %vm694, %v689, %v693
        %v696 = vmul.f32 %v686, %v695
        %v697 = vmul.f32 %v688, %v695
        %v698 = vsub.f32 %v675, %v696
        %v699 = vsub.f32 %v676, %v697
        %v700 = vmul.f32 %v698, %v698
        %v701 = vmul.f32 %v699, %v699
        %702 = vadd.xlane.f32.xlu0 %v700
        %v703 = vpop.xlane.xlu0 %702
        %704 = vadd.xlane.f32.xlu0 %v701
        %v705 = vpop.xlane.xlu0 %704
        %v706 = vmul.f32 %v703, %v695
        %v707 = vmul.f32 %v705, %v695
        %v708 = vadd.f32 %v706, 1e-05
        %v709 = vadd.f32 %v707, 1e-05
        %v710 = vrsqrt.pop %v708
        %v711 = vmul.f32 %v710, %v708
        %v712 = vmul.f32 %v711, %v710
        %v713 = vmul.f32 0.5, %v712
        %v714 = vsub.f32 1.5, %v713
        %v715 = vmul.f32 %v710, %v714
        %vm716 = vweird.f32 %v708
        %vm717 = vweird.f32 %v710
        %vm718 = vmor %vm716, %vm717
        %v719 = vsel %vm718, %v710, %v715
        %v720 = vrsqrt.pop %v709
        %v721 = vmul.f32 %v720, %v709
        %v722 = vmul.f32 %v721, %v720
        %v723 = vmul.f32 0.5, %v722
        %v724 = vsub.f32 1.5, %v723
        %v725 = vmul.f32 %v720, %v724
        %vm726 = vweird.f32 %v709
        %vm727 = vweird.f32 %v720
        %vm728 = vmor %vm726, %vm727
        %v729 = vsel %vm728, %v720, %v725
        %v730 = vmul.f32 %v698, %v719
        %v731 = vmul.f32 %v699, %v729
        %v733 = vperm.slane %v683, 0
        %v735 = vmul.f32 %v730, %v733
        %v736 = vmul.f32 %v731, %v733
        %v738 = vperm.slane %v684, 0
        %v740 = vadd.f32 %v735, %v738
        %v741 = vadd.f32 %v736, %v738
        %742 = vadd.xlane.f32.xlu0 %v677
        %v743 = vpop.xlane.xlu0 %742
        %744 = vadd.xlane.f32.xlu0 %v678
        %v745 = vpop.xlane.xlu0 %744
        %v746 = vmul.f32 %v743, %v695
        %v747 = vmul.f32 %v745, %v695
        %v748 = vsub.f32 %v677, %v746
        %v749 = vsub.f32 %v678, %v747
        %v750 = vmul.f32 %v748, %v748
        %v751 = vmul.f32 %v749, %v749
        %752 = vadd.xlane.f32.xlu0 %v750
        %v753 = vpop.xlane.xlu0 %752
        %754 = vadd.xlane.f32.xlu0 %v751
        %v755 = vpop.xlane.xlu0 %754
        %v756 = vmul.f32 %v753, %v695
        %v757 = vmul.f32 %v755, %v695
        %v758 = vadd.f32 %v756, 1e-05
        %v759 = vadd.f32 %v757, 1e-05
        %v760 = vrsqrt.pop %v758
        %v761 = vmul.f32 %v760, %v758
        %v762 = vmul.f32 %v761, %v760
        %v763 = vmul.f32 0.5, %v762
        %v764 = vsub.f32 1.5, %v763
        %v765 = vmul.f32 %v760, %v764
        %vm766 = vweird.f32 %v758
        %vm767 = vweird.f32 %v760
        %vm768 = vmor %vm766, %vm767
        %v769 = vsel %vm768, %v760, %v765
        %v770 = vrsqrt.pop %v759
        %v771 = vmul.f32 %v770, %v759
        %v772 = vmul.f32 %v771, %v770
        %v773 = vmul.f32 0.5, %v772
        %v774 = vsub.f32 1.5, %v773
        %v775 = vmul.f32 %v770, %v774
        %vm776 = vweird.f32 %v759
        %vm777 = vweird.f32 %v770
        %vm778 = vmor %vm776, %vm777
        %v779 = vsel %vm778, %v770, %v775
        %v780 = vmul.f32 %v748, %v769
        %v781 = vmul.f32 %v749, %v779
        %v782 = vmul.f32 %v780, %v733
        %v783 = vmul.f32 %v781, %v733
        %v784 = vadd.f32 %v782, %v738
        %v785 = vadd.f32 %v783, %v738
        %v786 = vld [vmem:[#allocation10] sm:$0xff]
        %v787 = vld [vmem:[#allocation10 + $0x18] sm:$0xff]
        %v788 = vld [vmem:[#allocation10 + $0x30] sm:$0xff]
        %v789 = vld [vmem:[#allocation10 + $0x48] sm:$0xff]
        %v790 = vld [vmem:[#allocation10 + $0x60] sm:$0xff]
        %v791 = vld [vmem:[#allocation10 + $0x78] sm:$0xff]
        %v792 = vld [vmem:[#allocation10 + $0x90] sm:$0xff]
        %v793 = vld [vmem:[#allocation10 + $0xa8] sm:$0xff]
        %v794 = vld [vmem:[#allocation10 + $0xc0] sm:$0xff]
        %v795 = vld [vmem:[#allocation10 + $0xd8] sm:$0xff]
        %v796 = vld [vmem:[#allocation10 + $0xf0] sm:$0xff]
        %v797 = vld [vmem:[#allocation10 + $0x108] sm:$0xff]
        %v798 = vld [vmem:[#allocation10 + $0x120] sm:$0xff]
        %v799 = vld [vmem:[#allocation10 + $0x138] sm:$0xff]
        %v800 = vld [vmem:[#allocation10 + $0x150] sm:$0xff]
        %v801 = vld [vmem:[#allocation10 + $0x168] sm:$0xff]
        %802 = vmatpush.msra.mxu0 %v801
        %803 = vmatpush.msra.mxu0 %v800
        %804 = vmatpush.msra.mxu0 %v799
        %805 = vmatpush.msra.mxu0 %v798
        %806 = vmatpush.msra.mxu0 %v797
        %807 = vmatpush.msra.mxu0 %v796
        %808 = vmatpush.msra.mxu0 %v795
        %809 = vmatpush.msra.mxu0 %v794
        %810 = vmatpush.msra.mxu0 %v793
        %811 = vmatpush.msra.mxu0 %v792
        %812 = vmatpush.msra.mxu0 %v791
        %813 = vmatpush.msra.mxu0 %v790
        %814 = vmatpush.msra.mxu0 %v789
        %815 = vmatpush.msra.mxu0 %v788
        %816 = vmatpush.msra.mxu0 %v787
        %817 = vmatpush.msra.mxu0 %v786
        %818 = vmatmul.f32.gmra.mxu0 %v740
        %v819 = vpop.f32.mrf.mxu0
        %v820 = vadd.f32 0.0, %v819
        %821 = vmatmul.f32.gmra.mxu0 %v741
        %v822 = vpop.f32.mrf.mxu0
        %v823 = vadd.f32 0.0, %v822
        %824 = vdwg.mxu0
        %v825 = vld [vmem:[#allocation10 + $0x8] sm:$0xff]
        %v826 = vld [vmem:[#allocation10 + $0x10] sm:$0xff]
        %v827 = vld [vmem:[#allocation10 + $0x20] sm:$0xff]
        %v828 = vld [vmem:[#allocation10 + $0x28] sm:$0xff]
        %v829 = vld [vmem:[#allocation10 + $0x38] sm:$0xff]
        %v830 = vld [vmem:[#allocation10 + $0x40] sm:$0xff]
        %v831 = vld [vmem:[#allocation10 + $0x50] sm:$0xff]
        %v832 = vld [vmem:[#allocation10 + $0x58] sm:$0xff]
        %v833 = vld [vmem:[#allocation10 + $0x68] sm:$0xff]
        %v834 = vld [vmem:[#allocation10 + $0x70] sm:$0xff]
        %v835 = vld [vmem:[#allocation10 + $0x80] sm:$0xff]
        %v836 = vld [vmem:[#allocation10 + $0x88] sm:$0xff]
        %v837 = vld [vmem:[#allocation10 + $0x98] sm:$0xff]
        %v838 = vld [vmem:[#allocation10 + $0xa0] sm:$0xff]
        %v839 = vld [vmem:[#allocation10 + $0xb0] sm:$0xff]
        %v840 = vld [vmem:[#allocation10 + $0xb8] sm:$0xff]
        %v841 = vld [vmem:[#allocation10 + $0xc8] sm:$0xff]
        %v842 = vld [vmem:[#allocation10 + $0xd0] sm:$0xff]
        %v843 = vld [vmem:[#allocation10 + $0xe0] sm:$0xff]
        %v844 = vld [vmem:[#allocation10 + $0xe8] sm:$0xff]
        %v845 = vld [vmem:[#allocation10 + $0xf8] sm:$0xff]
        %v846 = vld [vmem:[#allocation10 + $0x100] sm:$0xff]
        %v847 = vld [vmem:[#allocation10 + $0x110] sm:$0xff]
        %v848 = vld [vmem:[#allocation10 + $0x118] sm:$0xff]
        %v849 = vld [vmem:[#allocation10 + $0x128] sm:$0xff]
        %v850 = vld [vmem:[#allocation10 + $0x130] sm:$0xff]
        %v851 = vld [vmem:[#allocation10 + $0x140] sm:$0xff]
        %v852 = vld [vmem:[#allocation10 + $0x148] sm:$0xff]
        %v853 = vld [vmem:[#allocation10 + $0x158] sm:$0xff]
        %v854 = vld [vmem:[#allocation10 + $0x160] sm:$0xff]
        %v855 = vld [vmem:[#allocation10 + $0x170] sm:$0xff]
        %v856 = vld [vmem:[#allocation10 + $0x178] sm:$0xff]
        %857 = vmatpush.msra.mxu0 %v855
        %858 = vmatpush.msra.mxu0 %v853
        %859 = vmatpush.msra.mxu0 %v851
        %860 = vmatpush.msra.mxu0 %v849
        %861 = vmatpush.msra.mxu0 %v847
        %862 = vmatpush.msra.mxu0 %v845
        %863 = vmatpush.msra.mxu0 %v843
        %864 = vmatpush.msra.mxu0 %v841
        %865 = vmatpush.msra.mxu0 %v839
        %866 = vmatpush.msra.mxu0 %v837
        %867 = vmatpush.msra.mxu0 %v835
        %868 = vmatpush.msra.mxu0 %v833
        %869 = vmatpush.msra.mxu0 %v831
        %870 = vmatpush.msra.mxu0 %v829
        %871 = vmatpush.msra.mxu0 %v827
        %872 = vmatpush.msra.mxu0 %v825
        %873 = vmatmul.f32.gmra.mxu0 %v784
        %v874 = vpop.f32.mrf.mxu0
        %v875 = vadd.f32 0.0, %v874
        %876 = vmatmul.f32.gmra.mxu0 %v785
        %v877 = vpop.f32.mrf.mxu0
        %v878 = vadd.f32 0.0, %v877
        %879 = vdwg.mxu0
        %880 = vmatpush.msra.mxu0 %v856
        %881 = vmatpush.msra.mxu0 %v854
        %882 = vmatpush.msra.mxu0 %v852
        %883 = vmatpush.msra.mxu0 %v850
        %884 = vmatpush.msra.mxu0 %v848
        %885 = vmatpush.msra.mxu0 %v846
        %886 = vmatpush.msra.mxu0 %v844
        %887 = vmatpush.msra.mxu0 %v842
        %888 = vmatpush.msra.mxu0 %v840
        %889 = vmatpush.msra.mxu0 %v838
        %890 = vmatpush.msra.mxu0 %v836
        %891 = vmatpush.msra.mxu0 %v834
        %892 = vmatpush.msra.mxu0 %v832
        %893 = vmatpush.msra.mxu0 %v830
        %894 = vmatpush.msra.mxu0 %v828
        %895 = vmatpush.msra.mxu0 %v826
        %896 = vmatmul.f32.gmra.mxu0 %v784
        %v897 = vpop.f32.mrf.mxu0
        %v898 = vadd.f32 0.0, %v897
        %899 = vmatmul.f32.gmra.mxu0 %v785
        %v900 = vpop.f32.mrf.mxu0
        %v901 = vadd.f32 0.0, %v900
        %902 = vdwg.mxu0
        %vm903 = vcmask 261120
        %v905 = vsel %vm903, %v820, 0
        %v908 = vsel %vm903, %v823, 0
        %v911 = vsel %vm903, %v875, 0
        %v914 = vsel %vm903, %v878, 0
        %916 = vmatpush.xpose.msra.mxu0 0.0
        %917 = vmatpush.xpose.msra.mxu0 0.0
        %918 = vmatpush.xpose.msra.mxu0 0.0
        %919 = vmatpush.xpose.msra.mxu0 0.0
        %920 = vmatpush.xpose.msra.mxu0 0.0
        %921 = vmatpush.xpose.msra.mxu0 0.0
        %922 = vmatpush.xpose.msra.mxu0 0.0
        %923 = vmatpush.xpose.msra.mxu0 0.0
        %924 = vmatpush.xpose.msra.mxu0 0.0
        %925 = vmatpush.xpose.msra.mxu0 0.0
        %926 = vmatpush.xpose.msra.mxu0 0.0
        %927 = vmatpush.xpose.msra.mxu0 0.0
        %928 = vmatpush.xpose.msra.mxu0 0.0
        %929 = vmatpush.xpose.msra.mxu0 0.0
        %930 = vmatpush.xpose.msra.mxu0 %v914
        %931 = vmatpush.xpose.msra.mxu0 %v911
        %932 = vmatmul.f32.gmra.mxu0 %v905
        %v933 = vpop.f32.mrf.mxu0
        %v934 = vadd.f32 0.0, %v933
        %935 = vmatmul.f32.gmra.mxu0 %v908
        %v936 = vpop.f32.mrf.mxu0
        %v937 = vadd.f32 0.0, %v936
        %938 = vdwg.mxu0
        %v939 = vmul.f32 %v934, 0.17677669
        %v940 = vmul.f32 %v937, 0.17677669
        %v941 = vsel %vm681, -1e+30, %v939
        %v942 = vsel %vm682, -1e+30, %v940
        %vm943 = vcmask 130048
        %v944 = vsel %vm943, %v941, -inf
        %945 = vmax.xlane.f32.xlu0 %v944
        %v946 = vpop.xlane.xlu0 %945
        %v947 = vsel %vm943, %v942, -inf
        %948 = vmax.xlane.f32.xlu0 %v947
        %v949 = vpop.xlane.xlu0 %948
        %v950 = vsub.f32 %v941, %v946
        %v951 = vsub.f32 %v942, %v949
        %v952 = vmul.f32 %v950, 1.442695
        %v953 = vpow.pop %v952
        %v954 = vmul.f32 %v951, 1.442695
        %v955 = vpow.pop %v954
        %v956 = vsel %vm943, %v953, 0.0
        %957 = vadd.xlane.f32.xlu0 %v956
        %v958 = vpop.xlane.xlu0 %957
        %v959 = vsel %vm943, %v955, 0.0
        %960 = vadd.xlane.f32.xlu0 %v959
        %v961 = vpop.xlane.xlu0 %960
        %v962 = vrcp.pop %v958
        %v963 = vmul.f32 %v958, %v962
        %v964 = vsub.f32 1.0, %v963
        %v965 = vmul.f32 %v962, %v964
        %v966 = vadd.f32 %v962, %v965
        %vm967 = vweird.f32 %v958
        %vm968 = vweird.f32 %v962
        %vm969 = vmor %vm967, %vm968
        %v970 = vsel %vm969, %v962, %v966
        %v971 = vand.u32 2147483647, %v958
        %vm972 = vcmp.eq.f32.partialorder %v971, 8.507059e+37
        %v973 = vand.u32 %v958, 2147483648
        %v974 = vor.u32 1.1754944e-38, %v973
        %v975 = vsel %vm972, %v974, %v970
        %v976 = vrcp.pop %v961
        %v977 = vmul.f32 %v961, %v976
        %v978 = vsub.f32 1.0, %v977
        %v979 = vmul.f32 %v976, %v978
        %v980 = vadd.f32 %v976, %v979
        %vm981 = vweird.f32 %v961
        %vm982 = vweird.f32 %v976
        %vm983 = vmor %vm981, %vm982
        %v984 = vsel %vm983, %v976, %v980
        %v985 = vand.u32 2147483647, %v961
        %vm986 = vcmp.eq.f32.partialorder %v985, 8.507059e+37
        %v987 = vand.u32 %v961, 2147483648
        %v988 = vor.u32 1.1754944e-38, %v987
        %v989 = vsel %vm986, %v988, %v984
        %v990 = vmul.f32 %v953, %v975
        %v991 = vmul.f32 %v955, %v989
        %v993 = vsel %vm943, %v990, 0
        %v996 = vsel %vm943, %v991, 0
        %998 = vmatpush.msra.mxu0 0.0
        %999 = vmatpush.msra.mxu0 0.0
        %1000 = vmatpush.msra.mxu0 0.0
        %1001 = vmatpush.msra.mxu0 0.0
        %1002 = vmatpush.msra.mxu0 0.0
        %1003 = vmatpush.msra.mxu0 0.0
        %1004 = vmatpush.msra.mxu0 0.0
        %1005 = vmatpush.msra.mxu0 0.0
        %1006 = vmatpush.msra.mxu0 0.0
        %1007 = vmatpush.msra.mxu0 0.0
        %1008 = vmatpush.msra.mxu0 0.0
        %1009 = vmatpush.msra.mxu0 0.0
        %1010 = vmatpush.msra.mxu0 0.0
        %1011 = vmatpush.msra.mxu0 0.0
        %1012 = vmatpush.msra.mxu0 %v901
        %1013 = vmatpush.msra.mxu0 %v898
        %1014 = vmatmul.f32.gmra.mxu0 %v993
        %v1015 = vpop.f32.mrf.mxu0
        %v1016 = vadd.f32 0.0, %v1015
        %1017 = vmatmul.f32.gmra.mxu0 %v996
        %v1018 = vpop.f32.mrf.mxu0
        %v1019 = vadd.f32 0.0, %v1018
        %1020 = vdwg.mxu0
        %v1021 = vld [vmem:[#allocation11] sm:$0xff]
        %v1022 = vld [vmem:[#allocation11 + $0x8] sm:$0xff]
        %v1023 = vld [vmem:[#allocation11 + $0x10] sm:$0xff]
        %v1024 = vld [vmem:[#allocation11 + $0x18] sm:$0xff]
        %1025 = vrot.lane.b32.xlu0 %v820, 96
        %v1026 = vpop.permute.xlu0 %1025
        %1027 = vrot.lane.b32.xlu0 %v823, 96
        %v1028 = vpop.permute.xlu0 %1027
        %1029 = vrot.lane.b32.xlu0 %v875, 96
        %v1030 = vpop.permute.xlu0 %1029
        %1031 = vrot.lane.b32.xlu0 %v878, 96
        %v1032 = vpop.permute.xlu0 %1031
        %v1033 = vsel %vm903, %v1026, 0
        %v1035 = vsel %vm903, %v1028, 0
        %v1037 = vsel %vm903, %v1030, 0
        %v1039 = vsel %vm903, %v1032, 0
        %1041 = vmatpush.xpose.msra.mxu0 0.0
        %1042 = vmatpush.xpose.msra.mxu0 0.0
        %1043 = vmatpush.xpose.msra.mxu0 0.0
        %1044 = vmatpush.xpose.msra.mxu0 0.0
        %1045 = vmatpush.xpose.msra.mxu0 0.0
        %1046 = vmatpush.xpose.msra.mxu0 0.0
        %1047 = vmatpush.xpose.msra.mxu0 0.0
        %1048 = vmatpush.xpose.msra.mxu0 0.0
        %1049 = vmatpush.xpose.msra.mxu0 0.0
        %1050 = vmatpush.xpose.msra.mxu0 0.0
        %1051 = vmatpush.xpose.msra.mxu0 0.0
        %1052 = vmatpush.xpose.msra.mxu0 0.0
        %1053 = vmatpush.xpose.msra.mxu0 0.0
        %1054 = vmatpush.xpose.msra.mxu0 0.0
        %1055 = vmatpush.xpose.msra.mxu0 %v1039
        %1056 = vmatpush.xpose.msra.mxu0 %v1037
        %1057 = vmatmul.f32.gmra.mxu0 %v1033
        %v1058 = vpop.f32.mrf.mxu0
        %v1059 = vadd.f32 0.0, %v1058
        %1060 = vmatmul.f32.gmra.mxu0 %v1035
        %v1061 = vpop.f32.mrf.mxu0
        %v1062 = vadd.f32 0.0, %v1061
        %1063 = vdwg.mxu0
        %v1064 = vmul.f32 %v1059, 0.17677669
        %v1065 = vmul.f32 %v1062, 0.17677669
        %v1066 = vsel %vm681, -1e+30, %v1064
        %v1067 = vsel %vm682, -1e+30, %v1065
        %v1068 = vsel %vm943, %v1066, -inf
        %1069 = vmax.xlane.f32.xlu0 %v1068
        %v1070 = vpop.xlane.xlu0 %1069
        %v1071 = vsel %vm943, %v1067, -inf
        %1072 = vmax.xlane.f32.xlu0 %v1071
        %v1073 = vpop.xlane.xlu0 %1072
        %v1074 = vsub.f32 %v1066, %v1070
        %v1075 = vsub.f32 %v1067, %v1073
        %v1076 = vmul.f32 %v1074, 1.442695
        %v1077 = vpow.pop %v1076
        %v1078 = vmul.f32 %v1075, 1.442695
        %v1079 = vpow.pop %v1078
        %v1080 = vsel %vm943, %v1077, 0.0
        %1081 = vadd.xlane.f32.xlu0 %v1080
        %v1082 = vpop.xlane.xlu0 %1081
        %v1083 = vsel %vm943, %v1079, 0.0
        %1084 = vadd.xlane.f32.xlu0 %v1083
        %v1085 = vpop.xlane.xlu0 %1084
        %v1086 = vrcp.pop %v1082
        %v1087 = vmul.f32 %v1082, %v1086
        %v1088 = vsub.f32 1.0, %v1087
        %v1089 = vmul.f32 %v1086, %v1088
        %v1090 = vadd.f32 %v1086, %v1089
        %vm1091 = vweird.f32 %v1082
        %vm1092 = vweird.f32 %v1086
        %vm1093 = vmor %vm1091, %vm1092
        %v1094 = vsel %vm1093, %v1086, %v1090
        %v1095 = vand.u32 2147483647, %v1082
        %vm1096 = vcmp.eq.f32.partialorder %v1095, 8.507059e+37
        %v1097 = vand.u32 %v1082, 2147483648
        %v1098 = vor.u32 1.1754944e-38, %v1097
        %v1099 = vsel %vm1096, %v1098, %v1094
        %v1100 = vrcp.pop %v1085
        %v1101 = vmul.f32 %v1085, %v1100
        %v1102 = vsub.f32 1.0, %v1101
        %v1103 = vmul.f32 %v1100, %v1102
        %v1104 = vadd.f32 %v1100, %v1103
        %vm1105 = vweird.f32 %v1085
        %vm1106 = vweird.f32 %v1100
        %vm1107 = vmor %vm1105, %vm1106
        %v1108 = vsel %vm1107, %v1100, %v1104
        %v1109 = vand.u32 2147483647, %v1085
        %vm1110 = vcmp.eq.f32.partialorder %v1109, 8.507059e+37
        %v1111 = vand.u32 %v1085, 2147483648
        %v1112 = vor.u32 1.1754944e-38, %v1111
        %v1113 = vsel %vm1110, %v1112, %v1108
        %v1114 = vmul.f32 %v1077, %v1099
        %v1115 = vmul.f32 %v1079, %v1113
        %1118 = vrot.lane.b32.xlu0 %v898, 96
        %v1119 = vpop.permute.xlu0 %1118
        %1120 = vrot.lane.b32.xlu0 %v901, 96
        %v1121 = vpop.permute.xlu0 %1120
        %v1125 = vsel %vm943, %v1114, 0
        %v1128 = vsel %vm943, %v1115, 0
        %1130 = vmatpush.msra.mxu0 0.0
        %1131 = vmatpush.msra.mxu0 0.0
        %1132 = vmatpush.msra.mxu0 0.0
        %1133 = vmatpush.msra.mxu0 0.0
        %1134 = vmatpush.msra.mxu0 0.0
        %1135 = vmatpush.msra.mxu0 0.0
        %1136 = vmatpush.msra.mxu0 0.0
        %1137 = vmatpush.msra.mxu0 0.0
        %1138 = vmatpush.msra.mxu0 0.0
        %1139 = vmatpush.msra.mxu0 0.0
        %1140 = vmatpush.msra.mxu0 0.0
        %1141 = vmatpush.msra.mxu0 0.0
        %1142 = vmatpush.msra.mxu0 0.0
        %1143 = vmatpush.msra.mxu0 0.0
        %1144 = vmatpush.msra.mxu0 %v1121
        %1145 = vmatpush.msra.mxu0 %v1119
        %1146 = vmatmul.f32.gmra.mxu0 %v1125
        %v1147 = vpop.f32.mrf.mxu0
        %v1148 = vadd.f32 0.0, %v1147
        %1149 = vmatmul.f32.gmra.mxu0 %v1128
        %v1150 = vpop.f32.mrf.mxu0
        %v1151 = vadd.f32 0.0, %v1150
        %1152 = vdwg.mxu0
        %v1153 = vld [vmem:[#allocation11 + $0x20] sm:$0xff]
        %v1154 = vld [vmem:[#allocation11 + $0x28] sm:$0xff]
        %v1155 = vld [vmem:[#allocation11 + $0x30] sm:$0xff]
        %v1156 = vld [vmem:[#allocation11 + $0x38] sm:$0xff]
        %v1158 = vsel %vm903, %v1148, 0
        %v1161 = vsel %vm903, %v1151, 0
        %1163 = vmatpush.msra.mxu0 0.0
        %1164 = vmatpush.msra.mxu0 0.0
        %1165 = vmatpush.msra.mxu0 0.0
        %1166 = vmatpush.msra.mxu0 0.0
        %1167 = vmatpush.msra.mxu0 0.0
        %1168 = vmatpush.msra.mxu0 0.0
        %1169 = vmatpush.msra.mxu0 0.0
        %1170 = vmatpush.msra.mxu0 0.0
        %1171 = vmatpush.msra.mxu0 0.0
        %1172 = vmatpush.msra.mxu0 0.0
        %1173 = vmatpush.msra.mxu0 0.0
        %1174 = vmatpush.msra.mxu0 0.0
        %1175 = vmatpush.msra.mxu0 %v1156
        %1176 = vmatpush.msra.mxu0 %v1155
        %1177 = vmatpush.msra.mxu0 %v1154
        %1178 = vmatpush.msra.mxu0 %v1153
        %1179 = vmatmul.f32.gmra.mxu0 %v1158
        %v1180 = vpop.f32.mrf.mxu0
        %v1181 = vadd.f32 0.0, %v1180
        %1182 = vmatmul.f32.gmra.mxu0 %v1161
        %v1183 = vpop.f32.mrf.mxu0
        %v1184 = vadd.f32 0.0, %v1183
        %1185 = vdwg.mxu0
        %v1187 = vsel %vm903, %v1016, 0
        %v1190 = vsel %vm903, %v1019, 0
        %1192 = vmatpush.msra.mxu0 0.0
        %1193 = vmatpush.msra.mxu0 0.0
        %1194 = vmatpush.msra.mxu0 0.0
        %1195 = vmatpush.msra.mxu0 0.0
        %1196 = vmatpush.msra.mxu0 0.0
        %1197 = vmatpush.msra.mxu0 0.0
        %1198 = vmatpush.msra.mxu0 0.0
        %1199 = vmatpush.msra.mxu0 0.0
        %1200 = vmatpush.msra.mxu0 0.0
        %1201 = vmatpush.msra.mxu0 0.0
        %1202 = vmatpush.msra.mxu0 0.0
        %1203 = vmatpush.msra.mxu0 0.0
        %1204 = vmatpush.msra.mxu0 %v1024
        %1205 = vmatpush.msra.mxu0 %v1023
        %1206 = vmatpush.msra.mxu0 %v1022
        %1207 = vmatpush.msra.mxu0 %v1021
        %1208 = vmatmul.f32.gmra.mxu0 %v1187
        %v1209 = vpop.f32.mrf.mxu0
        %v1210 = vadd.f32 %v1181, %v1209
        %1211 = vmatmul.f32.gmra.mxu0 %v1190
        %v1212 = vpop.f32.mrf.mxu0
        %v1213 = vadd.f32 %v1184, %v1212
        %1214 = vdwg.mxu0
        %1215 = vrot.lane.b32.xlu0 %v820, 64
        %v1216 = vpop.permute.xlu0 %1215
        %1217 = vrot.lane.b32.xlu0 %v823, 64
        %v1218 = vpop.permute.xlu0 %1217
        %1219 = vrot.lane.b32.xlu0 %v875, 64
        %v1220 = vpop.permute.xlu0 %1219
        %1221 = vrot.lane.b32.xlu0 %v878, 64
        %v1222 = vpop.permute.xlu0 %1221
        %v1223 = vsel %vm903, %v1216, 0
        %v1225 = vsel %vm903, %v1218, 0
        %v1227 = vsel %vm903, %v1220, 0
        %v1229 = vsel %vm903, %v1222, 0
        %1231 = vmatpush.xpose.msra.mxu0 0.0
        %1232 = vmatpush.xpose.msra.mxu0 0.0
        %1233 = vmatpush.xpose.msra.mxu0 0.0
        %1234 = vmatpush.xpose.msra.mxu0 0.0
        %1235 = vmatpush.xpose.msra.mxu0 0.0
        %1236 = vmatpush.xpose.msra.mxu0 0.0
        %1237 = vmatpush.xpose.msra.mxu0 0.0
        %1238 = vmatpush.xpose.msra.mxu0 0.0
        %1239 = vmatpush.xpose.msra.mxu0 0.0
        %1240 = vmatpush.xpose.msra.mxu0 0.0
        %1241 = vmatpush.xpose.msra.mxu0 0.0
        %1242 = vmatpush.xpose.msra.mxu0 0.0
        %1243 = vmatpush.xpose.msra.mxu0 0.0
        %1244 = vmatpush.xpose.msra.mxu0 0.0
        %1245 = vmatpush.xpose.msra.mxu0 %v1229
        %1246 = vmatpush.xpose.msra.mxu0 %v1227
        %1247 = vmatmul.f32.gmra.mxu0 %v1223
        %v1248 = vpop.f32.mrf.mxu0
        %v1249 = vadd.f32 0.0, %v1248
        %1250 = vmatmul.f32.gmra.mxu0 %v1225
        %v1251 = vpop.f32.mrf.mxu0
        %v1252 = vadd.f32 0.0, %v1251
        %1253 = vdwg.mxu0
        %v1254 = vmul.f32 %v1249, 0.17677669
        %v1255 = vmul.f32 %v1252, 0.17677669
        %v1256 = vsel %vm681, -1e+30, %v1254
        %v1257 = vsel %vm682, -1e+30, %v1255
        %v1258 = vsel %vm943, %v1256, -inf
        %1259 = vmax.xlane.f32.xlu0 %v1258
        %v1260 = vpop.xlane.xlu0 %1259
        %v1261 = vsel %vm943, %v1257, -inf
        %1262 = vmax.xlane.f32.xlu0 %v1261
        %v1263 = vpop.xlane.xlu0 %1262
        %v1264 = vsub.f32 %v1256, %v1260
        %v1265 = vsub.f32 %v1257, %v1263
        %v1266 = vmul.f32 %v1264, 1.442695
        %v1267 = vpow.pop %v1266
        %v1268 = vmul.f32 %v1265, 1.442695
        %v1269 = vpow.pop %v1268
        %v1270 = vsel %vm943, %v1267, 0.0
        %1271 = vadd.xlane.f32.xlu0 %v1270
        %v1272 = vpop.xlane.xlu0 %1271
        %v1273 = vsel %vm943, %v1269, 0.0
        %1274 = vadd.xlane.f32.xlu0 %v1273
        %v1275 = vpop.xlane.xlu0 %1274
        %v1276 = vrcp.pop %v1272
        %v1277 = vmul.f32 %v1272, %v1276
        %v1278 = vsub.f32 1.0, %v1277
        %v1279 = vmul.f32 %v1276, %v1278
        %v1280 = vadd.f32 %v1276, %v1279
        %vm1281 = vweird.f32 %v1272
        %vm1282 = vweird.f32 %v1276
        %vm1283 = vmor %vm1281, %vm1282
        %v1284 = vsel %vm1283, %v1276, %v1280
        %v1285 = vand.u32 2147483647, %v1272
        %vm1286 = vcmp.eq.f32.partialorder %v1285, 8.507059e+37
        %v1287 = vand.u32 %v1272, 2147483648
        %v1288 = vor.u32 1.1754944e-38, %v1287
        %v1289 = vsel %vm1286, %v1288, %v1284
        %v1290 = vrcp.pop %v1275
        %v1291 = vmul.f32 %v1275, %v1290
        %v1292 = vsub.f32 1.0, %v1291
        %v1293 = vmul.f32 %v1290, %v1292
        %v1294 = vadd.f32 %v1290, %v1293
        %vm1295 = vweird.f32 %v1275
        %vm1296 = vweird.f32 %v1290
        %vm1297 = vmor %vm1295, %vm1296
        %v1298 = vsel %vm1297, %v1290, %v1294
        %v1299 = vand.u32 2147483647, %v1275
        %vm1300 = vcmp.eq.f32.partialorder %v1299, 8.507059e+37
        %v1301 = vand.u32 %v1275, 2147483648
        %v1302 = vor.u32 1.1754944e-38, %v1301
        %v1303 = vsel %vm1300, %v1302, %v1298
        %v1304 = vmul.f32 %v1267, %v1289
        %v1305 = vmul.f32 %v1269, %v1303
        %1306 = vrot.lane.b32.xlu0 %v898, 64
        %v1307 = vpop.permute.xlu0 %1306
        %1308 = vrot.lane.b32.xlu0 %v901, 64
        %v1309 = vpop.permute.xlu0 %1308
        %v1313 = vsel %vm943, %v1304, 0
        %v1316 = vsel %vm943, %v1305, 0
        %1318 = vmatpush.msra.mxu0 0.0
        %1319 = vmatpush.msra.mxu0 0.0
        %1320 = vmatpush.msra.mxu0 0.0
        %1321 = vmatpush.msra.mxu0 0.0
        %1322 = vmatpush.msra.mxu0 0.0
        %1323 = vmatpush.msra.mxu0 0.0
        %1324 = vmatpush.msra.mxu0 0.0
        %1325 = vmatpush.msra.mxu0 0.0
        %1326 = vmatpush.msra.mxu0 0.0
        %1327 = vmatpush.msra.mxu0 0.0
        %1328 = vmatpush.msra.mxu0 0.0
        %1329 = vmatpush.msra.mxu0 0.0
        %1330 = vmatpush.msra.mxu0 0.0
        %1331 = vmatpush.msra.mxu0 0.0
        %1332 = vmatpush.msra.mxu0 %v1309
        %1333 = vmatpush.msra.mxu0 %v1307
        %1334 = vmatmul.f32.gmra.mxu0 %v1313
        %v1335 = vpop.f32.mrf.mxu0
        %v1336 = vadd.f32 0.0, %v1335
        %1337 = vmatmul.f32.gmra.mxu0 %v1316
        %v1338 = vpop.f32.mrf.mxu0
        %v1339 = vadd.f32 0.0, %v1338
        %1340 = vdwg.mxu0
        %v1341 = vld [vmem:[#allocation11 + $0x40] sm:$0xff]
        %v1342 = vld [vmem:[#allocation11 + $0x48] sm:$0xff]
        %v1343 = vld [vmem:[#allocation11 + $0x50] sm:$0xff]
        %v1344 = vld [vmem:[#allocation11 + $0x58] sm:$0xff]
        %v1346 = vsel %vm903, %v1336, 0
        %v1349 = vsel %vm903, %v1339, 0
        %1351 = vmatpush.msra.mxu0 0.0
        %1352 = vmatpush.msra.mxu0 0.0
        %1353 = vmatpush.msra.mxu0 0.0
        %1354 = vmatpush.msra.mxu0 0.0
        %1355 = vmatpush.msra.mxu0 0.0
        %1356 = vmatpush.msra.mxu0 0.0
        %1357 = vmatpush.msra.mxu0 0.0
        %1358 = vmatpush.msra.mxu0 0.0
        %1359 = vmatpush.msra.mxu0 0.0
        %1360 = vmatpush.msra.mxu0 0.0
        %1361 = vmatpush.msra.mxu0 0.0
        %1362 = vmatpush.msra.mxu0 0.0
        %1363 = vmatpush.msra.mxu0 %v1344
        %1364 = vmatpush.msra.mxu0 %v1343
        %1365 = vmatpush.msra.mxu0 %v1342
        %1366 = vmatpush.msra.mxu0 %v1341
        %1367 = vmatmul.f32.gmra.mxu0 %v1346
        %v1368 = vpop.f32.mrf.mxu0
        %v1369 = vadd.f32 0.0, %v1368
        %1370 = vmatmul.f32.gmra.mxu0 %v1349
        %v1371 = vpop.f32.mrf.mxu0
        %v1372 = vadd.f32 0.0, %v1371
        %1373 = vdwg.mxu0
        %v1374 = vadd.f32 %v1210, %v1369
        %v1375 = vadd.f32 %v1213, %v1372
        %1376 = vrot.lane.b32.xlu0 %v820, 32
        %v1377 = vpop.permute.xlu0 %1376
        %1378 = vrot.lane.b32.xlu0 %v823, 32
        %v1379 = vpop.permute.xlu0 %1378
        %1380 = vrot.lane.b32.xlu0 %v875, 32
        %v1381 = vpop.permute.xlu0 %1380
        %1382 = vrot.lane.b32.xlu0 %v878, 32
        %v1383 = vpop.permute.xlu0 %1382
        %v1384 = vsel %vm903, %v1377, 0
        %v1386 = vsel %vm903, %v1379, 0
        %v1388 = vsel %vm903, %v1381, 0
        %v1390 = vsel %vm903, %v1383, 0
        %1392 = vmatpush.xpose.msra.mxu0 0.0
        %1393 = vmatpush.xpose.msra.mxu0 0.0
        %1394 = vmatpush.xpose.msra.mxu0 0.0
        %1395 = vmatpush.xpose.msra.mxu0 0.0
        %1396 = vmatpush.xpose.msra.mxu0 0.0
        %1397 = vmatpush.xpose.msra.mxu0 0.0
        %1398 = vmatpush.xpose.msra.mxu0 0.0
        %1399 = vmatpush.xpose.msra.mxu0 0.0
        %1400 = vmatpush.xpose.msra.mxu0 0.0
        %1401 = vmatpush.xpose.msra.mxu0 0.0
        %1402 = vmatpush.xpose.msra.mxu0 0.0
        %1403 = vmatpush.xpose.msra.mxu0 0.0
        %1404 = vmatpush.xpose.msra.mxu0 0.0
        %1405 = vmatpush.xpose.msra.mxu0 0.0
        %1406 = vmatpush.xpose.msra.mxu0 %v1390
        %1407 = vmatpush.xpose.msra.mxu0 %v1388
        %1408 = vmatmul.f32.gmra.mxu0 %v1384
        %v1409 = vpop.f32.mrf.mxu0
        %v1410 = vadd.f32 0.0, %v1409
        %1411 = vmatmul.f32.gmra.mxu0 %v1386
        %v1412 = vpop.f32.mrf.mxu0
        %v1413 = vadd.f32 0.0, %v1412
        %1414 = vdwg.mxu0
        %v1415 = vmul.f32 %v1410, 0.17677669
        %v1416 = vmul.f32 %v1413, 0.17677669
        %v1417 = vsel %vm681, -1e+30, %v1415
        %v1418 = vsel %vm682, -1e+30, %v1416
        %v1419 = vsel %vm943, %v1417, -inf
        %1420 = vmax.xlane.f32.xlu0 %v1419
        %v1421 = vpop.xlane.xlu0 %1420
        %v1422 = vsel %vm943, %v1418, -inf
        %1423 = vmax.xlane.f32.xlu0 %v1422
        %v1424 = vpop.xlane.xlu0 %1423
        %v1425 = vsub.f32 %v1417, %v1421
        %v1426 = vsub.f32 %v1418, %v1424
        %v1427 = vmul.f32 %v1425, 1.442695
        %v1428 = vpow.pop %v1427
        %v1429 = vmul.f32 %v1426, 1.442695
        %v1430 = vpow.pop %v1429
        %v1431 = vsel %vm943, %v1428, 0.0
        %1432 = vadd.xlane.f32.xlu0 %v1431
        %v1433 = vpop.xlane.xlu0 %1432
        %v1434 = vsel %vm943, %v1430, 0.0
        %1435 = vadd.xlane.f32.xlu0 %v1434
        %v1436 = vpop.xlane.xlu0 %1435
        %v1437 = vrcp.pop %v1433
        %v1438 = vmul.f32 %v1433, %v1437
        %v1439 = vsub.f32 1.0, %v1438
        %v1440 = vmul.f32 %v1437, %v1439
        %v1441 = vadd.f32 %v1437, %v1440
        %vm1442 = vweird.f32 %v1433
        %vm1443 = vweird.f32 %v1437
        %vm1444 = vmor %vm1442, %vm1443
        %v1445 = vsel %vm1444, %v1437, %v1441
        %v1446 = vand.u32 2147483647, %v1433
        %vm1447 = vcmp.eq.f32.partialorder %v1446, 8.507059e+37
        %v1448 = vand.u32 %v1433, 2147483648
        %v1449 = vor.u32 1.1754944e-38, %v1448
        %v1450 = vsel %vm1447, %v1449, %v1445
        %v1451 = vrcp.pop %v1436
        %v1452 = vmul.f32 %v1436, %v1451
        %v1453 = vsub.f32 1.0, %v1452
        %v1454 = vmul.f32 %v1451, %v1453
        %v1455 = vadd.f32 %v1451, %v1454
        %vm1456 = vweird.f32 %v1436
        %vm1457 = vweird.f32 %v1451
        %vm1458 = vmor %vm1456, %vm1457
        %v1459 = vsel %vm1458, %v1451, %v1455
        %v1460 = vand.u32 2147483647, %v1436
        %vm1461 = vcmp.eq.f32.partialorder %v1460, 8.507059e+37
        %v1462 = vand.u32 %v1436, 2147483648
        %v1463 = vor.u32 1.1754944e-38, %v1462
        %v1464 = vsel %vm1461, %v1463, %v1459
        %v1465 = vmul.f32 %v1428, %v1450
        %v1466 = vmul.f32 %v1430, %v1464
        %1467 = vrot.lane.b32.xlu0 %v898, 32
        %v1468 = vpop.permute.xlu0 %1467
        %1469 = vrot.lane.b32.xlu0 %v901, 32
        %v1470 = vpop.permute.xlu0 %1469
        %v1474 = vsel %vm943, %v1465, 0
        %v1477 = vsel %vm943, %v1466, 0
        %1479 = vmatpush.msra.mxu0 0.0
        %1480 = vmatpush.msra.mxu0 0.0
        %1481 = vmatpush.msra.mxu0 0.0
        %1482 = vmatpush.msra.mxu0 0.0
        %1483 = vmatpush.msra.mxu0 0.0
        %1484 = vmatpush.msra.mxu0 0.0
        %1485 = vmatpush.msra.mxu0 0.0
        %1486 = vmatpush.msra.mxu0 0.0
        %1487 = vmatpush.msra.mxu0 0.0
        %1488 = vmatpush.msra.mxu0 0.0
        %1489 = vmatpush.msra.mxu0 0.0
        %1490 = vmatpush.msra.mxu0 0.0
        %1491 = vmatpush.msra.mxu0 0.0
        %1492 = vmatpush.msra.mxu0 0.0
        %1493 = vmatpush.msra.mxu0 %v1470
        %1494 = vmatpush.msra.mxu0 %v1468
        %1495 = vmatmul.f32.gmra.mxu0 %v1474
        %v1496 = vpop.f32.mrf.mxu0
        %v1497 = vadd.f32 0.0, %v1496
        %1498 = vmatmul.f32.gmra.mxu0 %v1477
        %v1499 = vpop.f32.mrf.mxu0
        %v1500 = vadd.f32 0.0, %v1499
        %1501 = vdwg.mxu0
        %v1502 = vld [vmem:[#allocation11 + $0x60] sm:$0xff]
        %v1503 = vld [vmem:[#allocation11 + $0x68] sm:$0xff]
        %v1504 = vld [vmem:[#allocation11 + $0x70] sm:$0xff]
        %v1505 = vld [vmem:[#allocation11 + $0x78] sm:$0xff]
        %v1507 = vsel %vm903, %v1497, 0
        %v1510 = vsel %vm903, %v1500, 0
        %1512 = vmatpush.msra.mxu0 0.0
        %1513 = vmatpush.msra.mxu0 0.0
        %1514 = vmatpush.msra.mxu0 0.0
        %1515 = vmatpush.msra.mxu0 0.0
        %1516 = vmatpush.msra.mxu0 0.0
        %1517 = vmatpush.msra.mxu0 0.0
        %1518 = vmatpush.msra.mxu0 0.0
        %1519 = vmatpush.msra.mxu0 0.0
        %1520 = vmatpush.msra.mxu0 0.0
        %1521 = vmatpush.msra.mxu0 0.0
        %1522 = vmatpush.msra.mxu0 0.0
        %1523 = vmatpush.msra.mxu0 0.0
        %1524 = vmatpush.msra.mxu0 %v1505
        %1525 = vmatpush.msra.mxu0 %v1504
        %1526 = vmatpush.msra.mxu0 %v1503
        %1527 = vmatpush.msra.mxu0 %v1502
        %1528 = vmatmul.f32.gmra.mxu0 %v1507
        %v1529 = vpop.f32.mrf.mxu0
        %v1530 = vadd.f32 0.0, %v1529
        %1531 = vmatmul.f32.gmra.mxu0 %v1510
        %v1532 = vpop.f32.mrf.mxu0
        %v1533 = vadd.f32 0.0, %v1532
        %1534 = vdwg.mxu0
        %v1535 = vadd.f32 %v1374, %v1530
        %v1536 = vadd.f32 %v1375, %v1533
        %v1537 = vld [vmem:[%s7] sm:$0x1]
        %v1539 = vperm.slane %v1537, 0
        %v1541 = vadd.f32 %v1535, %v1539
        %v1542 = vadd.f32 %v1536, %v1539
        %v1543 = vadd.f32 %v675, %v1541
        %v1544 = vadd.f32 %v676, %v1542
        %v1545 = vld [vmem:[%s8] sm:$0x1]
        %v1546 = vld [vmem:[%s9] sm:$0x1]
        %1547 = vadd.xlane.f32.xlu0 %v1543
        %v1548 = vpop.xlane.xlu0 %1547
        %1549 = vadd.xlane.f32.xlu0 %v1544
        %v1550 = vpop.xlane.xlu0 %1549
        %v1551 = vmul.f32 %v1548, %v695
        %v1552 = vmul.f32 %v1550, %v695
        %v1553 = vsub.f32 %v1543, %v1551
        %v1554 = vsub.f32 %v1544, %v1552
        %v1555 = vmul.f32 %v1553, %v1553
        %v1556 = vmul.f32 %v1554, %v1554
        %1557 = vadd.xlane.f32.xlu0 %v1555
        %v1558 = vpop.xlane.xlu0 %1557
        %1559 = vadd.xlane.f32.xlu0 %v1556
        %v1560 = vpop.xlane.xlu0 %1559
        %v1561 = vmul.f32 %v1558, %v695
        %v1562 = vmul.f32 %v1560, %v695
        %v1563 = vadd.f32 %v1561, 1e-05
        %v1564 = vadd.f32 %v1562, 1e-05
        %v1565 = vrsqrt.pop %v1563
        %v1566 = vmul.f32 %v1565, %v1563
        %v1567 = vmul.f32 %v1566, %v1565
        %v1568 = vmul.f32 0.5, %v1567
        %v1569 = vsub.f32 1.5, %v1568
        %v1570 = vmul.f32 %v1565, %v1569
        %vm1571 = vweird.f32 %v1563
        %vm1572 = vweird.f32 %v1565
        %vm1573 = vmor %vm1571, %vm1572
        %v1574 = vsel %vm1573, %v1565, %v1570
        %v1575 = vrsqrt.pop %v1564
        %v1576 = vmul.f32 %v1575, %v1564
        %v1577 = vmul.f32 %v1576, %v1575
        %v1578 = vmul.f32 0.5, %v1577
        %v1579 = vsub.f32 1.5, %v1578
        %v1580 = vmul.f32 %v1575, %v1579
        %vm1581 = vweird.f32 %v1564
        %vm1582 = vweird.f32 %v1575
        %vm1583 = vmor %vm1581, %vm1582
        %v1584 = vsel %vm1583, %v1575, %v1580
        %v1585 = vmul.f32 %v1553, %v1574
        %v1586 = vmul.f32 %v1554, %v1584
        %v1588 = vperm.slane %v1545, 0
        %v1590 = vmul.f32 %v1585, %v1588
        %v1591 = vmul.f32 %v1586, %v1588
        %v1593 = vperm.slane %v1546, 0
        %v1595 = vadd.f32 %v1590, %v1593
        %v1596 = vadd.f32 %v1591, %v1593
        %v1597 = vld [vmem:[#allocation13] sm:$0xff]
        %v1598 = vld [vmem:[#allocation13 + $0x8] sm:$0xff]
        %v1599 = vld [vmem:[#allocation13 + $0x10] sm:$0xff]
        %v1600 = vld [vmem:[#allocation13 + $0x18] sm:$0xff]
        %v1601 = vld [vmem:[#allocation13 + $0x20] sm:$0xff]
        %v1602 = vld [vmem:[#allocation13 + $0x28] sm:$0xff]
        %v1603 = vld [vmem:[#allocation13 + $0x30] sm:$0xff]
        %v1604 = vld [vmem:[#allocation13 + $0x38] sm:$0xff]
        %v1605 = vld [vmem:[#allocation13 + $0x40] sm:$0xff]
        %v1606 = vld [vmem:[#allocation13 + $0x48] sm:$0xff]
        %v1607 = vld [vmem:[#allocation13 + $0x50] sm:$0xff]
        %v1608 = vld [vmem:[#allocation13 + $0x58] sm:$0xff]
        %v1609 = vld [vmem:[#allocation13 + $0x60] sm:$0xff]
        %v1610 = vld [vmem:[#allocation13 + $0x68] sm:$0xff]
        %v1611 = vld [vmem:[#allocation13 + $0x70] sm:$0xff]
        %v1612 = vld [vmem:[#allocation13 + $0x78] sm:$0xff]
        %v1613 = vld [vmem:[#allocation13 + $0x80] sm:$0xff]
        %v1614 = vld [vmem:[#allocation13 + $0x88] sm:$0xff]
        %v1615 = vld [vmem:[#allocation13 + $0x90] sm:$0xff]
        %v1616 = vld [vmem:[#allocation13 + $0x98] sm:$0xff]
        %v1617 = vld [vmem:[#allocation13 + $0xa0] sm:$0xff]
        %v1618 = vld [vmem:[#allocation13 + $0xa8] sm:$0xff]
        %v1619 = vld [vmem:[#allocation13 + $0xb0] sm:$0xff]
        %v1620 = vld [vmem:[#allocation13 + $0xb8] sm:$0xff]
        %v1621 = vld [vmem:[#allocation13 + $0xc0] sm:$0xff]
        %v1622 = vld [vmem:[#allocation13 + $0xc8] sm:$0xff]
        %v1623 = vld [vmem:[#allocation13 + $0xd0] sm:$0xff]
        %v1624 = vld [vmem:[#allocation13 + $0xd8] sm:$0xff]
        %v1625 = vld [vmem:[#allocation13 + $0xe0] sm:$0xff]
        %v1626 = vld [vmem:[#allocation13 + $0xe8] sm:$0xff]
        %v1627 = vld [vmem:[#allocation13 + $0xf0] sm:$0xff]
        %v1628 = vld [vmem:[#allocation13 + $0xf8] sm:$0xff]
        %v1629 = vld [vmem:[%s11] sm:$0x3]
        %v1631 = vperm.slane %v1629, 0
        %v1632 = vperm.slane %v1629, 1
        %1635 = vmatpush.msra.mxu0 %v1627
        %1636 = vmatpush.msra.mxu0 %v1625
        %1637 = vmatpush.msra.mxu0 %v1623
        %1638 = vmatpush.msra.mxu0 %v1621
        %1639 = vmatpush.msra.mxu0 %v1619
        %1640 = vmatpush.msra.mxu0 %v1617
        %1641 = vmatpush.msra.mxu0 %v1615
        %1642 = vmatpush.msra.mxu0 %v1613
        %1643 = vmatpush.msra.mxu0 %v1611
        %1644 = vmatpush.msra.mxu0 %v1609
        %1645 = vmatpush.msra.mxu0 %v1607
        %1646 = vmatpush.msra.mxu0 %v1605
        %1647 = vmatpush.msra.mxu0 %v1603
        %1648 = vmatpush.msra.mxu0 %v1601
        %1649 = vmatpush.msra.mxu0 %v1599
        %1650 = vmatpush.msra.mxu0 %v1597
        %1651 = vmatmul.f32.gmra.mxu0 %v1595
        %v1652 = vpop.f32.mrf.mxu0
        %v1653 = vadd.f32 %v1631, %v1652
        %1654 = vmatmul.f32.gmra.mxu0 %v1596
        %v1655 = vpop.f32.mrf.mxu0
        %v1656 = vadd.f32 %v1631, %v1655
        %1657 = vdwg.mxu0
        %1658 = vmatpush.msra.mxu0 %v1628
        %1659 = vmatpush.msra.mxu0 %v1626
        %1660 = vmatpush.msra.mxu0 %v1624
        %1661 = vmatpush.msra.mxu0 %v1622
        %1662 = vmatpush.msra.mxu0 %v1620
        %1663 = vmatpush.msra.mxu0 %v1618
        %1664 = vmatpush.msra.mxu0 %v1616
        %1665 = vmatpush.msra.mxu0 %v1614
        %1666 = vmatpush.msra.mxu0 %v1612
        %1667 = vmatpush.msra.mxu0 %v1610
        %1668 = vmatpush.msra.mxu0 %v1608
        %1669 = vmatpush.msra.mxu0 %v1606
        %1670 = vmatpush.msra.mxu0 %v1604
        %1671 = vmatpush.msra.mxu0 %v1602
        %1672 = vmatpush.msra.mxu0 %v1600
        %1673 = vmatpush.msra.mxu0 %v1598
        %1674 = vmatmul.f32.gmra.mxu0 %v1595
        %v1675 = vpop.f32.mrf.mxu0
        %v1676 = vadd.f32 %v1632, %v1675
        %1677 = vmatmul.f32.gmra.mxu0 %v1596
        %v1678 = vpop.f32.mrf.mxu0
        %v1679 = vadd.f32 %v1632, %v1678
        %1680 = vdwg.mxu0
        %v1681 = vmul.f32 %v1653, 0.5
        %v1682 = vmul.f32 %v1676, 0.5
        %v1683 = vmul.f32 %v1656, 0.5
        %v1684 = vmul.f32 %v1679, 0.5
        %v1685 = vmul.f32 %v1653, 0.70710677
        %v1686 = vmul.f32 %v1676, 0.70710677
        %v1687 = vmul.f32 %v1656, 0.70710677
        %v1688 = vmul.f32 %v1679, 0.70710677
        %vm1689 = vcmp.ge.f32.partialorder %v1685, 0.0
        %vm1690 = vcmp.ge.f32.partialorder %v1686, 0.0
        %vm1691 = vcmp.ge.f32.partialorder %v1687, 0.0
        %vm1692 = vcmp.ge.f32.partialorder %v1688, 0.0
        %v1693 = vsel %vm1689, 1.0, -1.0
        %v1694 = vsel %vm1690, 1.0, -1.0
        %v1695 = vsel %vm1691, 1.0, -1.0
        %v1696 = vsel %vm1692, 1.0, -1.0
        %v1697 = vand.u32 2147483647, %v1685
        %v1698 = vand.u32 2147483647, %v1686
        %v1699 = vand.u32 2147483647, %v1687
        %v1700 = vand.u32 2147483647, %v1688
        %v1701 = vmul.f32 %v1697, 0.3275911
        %v1702 = vmul.f32 %v1698, 0.3275911
        %v1703 = vmul.f32 %v1699, 0.3275911
        %v1704 = vmul.f32 %v1700, 0.3275911
        %v1705 = vadd.f32 %v1701, 1.0
        %v1706 = vadd.f32 %v1702, 1.0
        %v1707 = vadd.f32 %v1703, 1.0
        %v1708 = vadd.f32 %v1704, 1.0
        %v1709 = vrcp.pop %v1705
        %v1710 = vmul.f32 %v1705, %v1709
        %v1711 = vsub.f32 1.0, %v1710
        %v1712 = vmul.f32 %v1709, %v1711
        %v1713 = vadd.f32 %v1709, %v1712
        %vm1714 = vweird.f32 %v1705
        %vm1715 = vweird.f32 %v1709
        %vm1716 = vmor %vm1714, %vm1715
        %v1717 = vsel %vm1716, %v1709, %v1713
        %v1718 = vand.u32 2147483647, %v1705
        %vm1719 = vcmp.eq.f32.partialorder %v1718, 8.507059e+37
        %v1720 = vand.u32 %v1705, 2147483648
        %v1721 = vor.u32 1.1754944e-38, %v1720
        %v1722 = vsel %vm1719, %v1721, %v1717
        %v1723 = vmul.f32 1.0, %v1722
        %v1724 = vrcp.pop %v1706
        %v1725 = vmul.f32 %v1706, %v1724
        %v1726 = vsub.f32 1.0, %v1725
        %v1727 = vmul.f32 %v1724, %v1726
        %v1728 = vadd.f32 %v1724, %v1727
        %vm1729 = vweird.f32 %v1706
        %vm1730 = vweird.f32 %v1724
        %vm1731 = vmor %vm1729, %vm1730
        %v1732 = vsel %vm1731, %v1724, %v1728
        %v1733 = vand.u32 2147483647, %v1706
        %vm1734 = vcmp.eq.f32.partialorder %v1733, 8.507059e+37
        %v1735 = vand.u32 %v1706, 2147483648
        %v1736 = vor.u32 1.1754944e-38, %v1735
        %v1737 = vsel %vm1734, %v1736, %v1732
        %v1738 = vmul.f32 1.0, %v1737
        %v1739 = vrcp.pop %v1707
        %v1740 = vmul.f32 %v1707, %v1739
        %v1741 = vsub.f32 1.0, %v1740
        %v1742 = vmul.f32 %v1739, %v1741
        %v1743 = vadd.f32 %v1739, %v1742
        %vm1744 = vweird.f32 %v1707
        %vm1745 = vweird.f32 %v1739
        %vm1746 = vmor %vm1744, %vm1745
        %v1747 = vsel %vm1746, %v1739, %v1743
        %v1748 = vand.u32 2147483647, %v1707
        %vm1749 = vcmp.eq.f32.partialorder %v1748, 8.507059e+37
        %v1750 = vand.u32 %v1707, 2147483648
        %v1751 = vor.u32 1.1754944e-38, %v1750
        %v1752 = vsel %vm1749, %v1751, %v1747
        %v1753 = vmul.f32 1.0, %v1752
        %v1754 = vrcp.pop %v1708
        %v1755 = vmul.f32 %v1708, %v1754
        %v1756 = vsub.f32 1.0, %v1755
        %v1757 = vmul.f32 %v1754, %v1756
        %v1758 = vadd.f32 %v1754, %v1757
        %vm1759 = vweird.f32 %v1708
        %vm1760 = vweird.f32 %v1754
        %vm1761 = vmor %vm1759, %vm1760
        %v1762 = vsel %vm1761, %v1754, %v1758
        %v1763 = vand.u32 2147483647, %v1708
        %vm1764 = vcmp.eq.f32.partialorder %v1763, 8.507059e+37
        %v1765 = vand.u32 %v1708, 2147483648
        %v1766 = vor.u32 1.1754944e-38, %v1765
        %v1767 = vsel %vm1764, %v1766, %v1762
        %v1768 = vmul.f32 1.0, %v1767
        %v1769 = vmul.f32 %v1723, 1.0614054
        %v1770 = vmul.f32 %v1738, 1.0614054
        %v1771 = vmul.f32 %v1753, 1.0614054
        %v1772 = vmul.f32 %v1768, 1.0614054
        %v1773 = vadd.f32 %v1769, -1.4531521
        %v1774 = vadd.f32 %v1770, -1.4531521
        %v1775 = vadd.f32 %v1771, -1.4531521
        %v1776 = vadd.f32 %v1772, -1.4531521
        %v1777 = vmul.f32 %v1773, %v1723
        %v1778 = vmul.f32 %v1774, %v1738
        %v1779 = vmul.f32 %v1775, %v1753
        %v1780 = vmul.f32 %v1776, %v1768
        %v1781 = vadd.f32 %v1777, 1.4214138
        %v1782 = vadd.f32 %v1778, 1.4214138
        %v1783 = vadd.f32 %v1779, 1.4214138
        %v1784 = vadd.f32 %v1780, 1.4214138
        %v1785 = vmul.f32 %v1781, %v1723
        %v1786 = vmul.f32 %v1782, %v1738
        %v1787 = vmul.f32 %v1783, %v1753
        %v1788 = vmul.f32 %v1784, %v1768
        %v1789 = vadd.f32 %v1785, -0.28449672
        %v1790 = vadd.f32 %v1786, -0.28449672
        %v1791 = vadd.f32 %v1787, -0.28449672
        %v1792 = vadd.f32 %v1788, -0.28449672
        %v1793 = vmul.f32 %v1789, %v1723
        %v1794 = vmul.f32 %v1790, %v1738
        %v1795 = vmul.f32 %v1791, %v1753
        %v1796 = vmul.f32 %v1792, %v1768
        %v1797 = vadd.f32 %v1793, 0.2548296
        %v1798 = vadd.f32 %v1794, 0.2548296
        %v1799 = vadd.f32 %v1795, 0.2548296
        %v1800 = vadd.f32 %v1796, 0.2548296
        %v1801 = vmul.f32 %v1797, %v1723
        %v1802 = vmul.f32 %v1798, %v1738
        %v1803 = vmul.f32 %v1799, %v1753
        %v1804 = vmul.f32 %v1800, %v1768
        %v1805 = vsub.f32 0.0, %v1697
        %v1806 = vsub.f32 0.0, %v1698
        %v1807 = vsub.f32 0.0, %v1699
        %v1808 = vsub.f32 0.0, %v1700
        %v1809 = vmul.f32 %v1805, %v1697
        %v1810 = vmul.f32 %v1806, %v1698
        %v1811 = vmul.f32 %v1807, %v1699
        %v1812 = vmul.f32 %v1808, %v1700
        %v1813 = vmul.f32 %v1809, 1.442695
        %v1814 = vpow.pop %v1813
        %v1815 = vmul.f32 %v1810, 1.442695
        %v1816 = vpow.pop %v1815
        %v1817 = vmul.f32 %v1811, 1.442695
        %v1818 = vpow.pop %v1817
        %v1819 = vmul.f32 %v1812, 1.442695
        %v1820 = vpow.pop %v1819
        %v1821 = vmul.f32 %v1801, %v1814
        %v1822 = vmul.f32 %v1802, %v1816
        %v1823 = vmul.f32 %v1803, %v1818
        %v1824 = vmul.f32 %v1804, %v1820
        %v1825 = vsub.f32 1.0, %v1821
        %v1826 = vsub.f32 1.0, %v1822
        %v1827 = vsub.f32 1.0, %v1823
        %v1828 = vsub.f32 1.0, %v1824
        %v1829 = vmul.f32 %v1693, %v1825
        %v1830 = vmul.f32 %v1694, %v1826
        %v1831 = vmul.f32 %v1695, %v1827
        %v1832 = vmul.f32 %v1696, %v1828
        %v1833 = vadd.f32 %v1829, 1.0
        %v1834 = vadd.f32 %v1830, 1.0
        %v1835 = vadd.f32 %v1831, 1.0
        %v1836 = vadd.f32 %v1832, 1.0
        %v1837 = vmul.f32 %v1681, %v1833
        %v1838 = vmul.f32 %v1682, %v1834
        %v1839 = vmul.f32 %v1683, %v1835
        %v1840 = vmul.f32 %v1684, %v1836
        %v1841 = vld [vmem:[#allocation14] sm:$0xff]
        %v1842 = vld [vmem:[#allocation14 + $0x8] sm:$0xff]
        %v1843 = vld [vmem:[#allocation14 + $0x10] sm:$0xff]
        %v1844 = vld [vmem:[#allocation14 + $0x18] sm:$0xff]
        %v1845 = vld [vmem:[#allocation14 + $0x20] sm:$0xff]
        %v1846 = vld [vmem:[#allocation14 + $0x28] sm:$0xff]
        %v1847 = vld [vmem:[#allocation14 + $0x30] sm:$0xff]
        %v1848 = vld [vmem:[#allocation14 + $0x38] sm:$0xff]
        %v1849 = vld [vmem:[#allocation14 + $0x40] sm:$0xff]
        %v1850 = vld [vmem:[#allocation14 + $0x48] sm:$0xff]
        %v1851 = vld [vmem:[#allocation14 + $0x50] sm:$0xff]
        %v1852 = vld [vmem:[#allocation14 + $0x58] sm:$0xff]
        %v1853 = vld [vmem:[#allocation14 + $0x60] sm:$0xff]
        %v1854 = vld [vmem:[#allocation14 + $0x68] sm:$0xff]
        %v1855 = vld [vmem:[#allocation14 + $0x70] sm:$0xff]
        %v1856 = vld [vmem:[#allocation14 + $0x78] sm:$0xff]
        %v1857 = vld [vmem:[#allocation14 + $0x80] sm:$0xff]
        %v1858 = vld [vmem:[#allocation14 + $0x88] sm:$0xff]
        %v1859 = vld [vmem:[#allocation14 + $0x90] sm:$0xff]
        %v1860 = vld [vmem:[#allocation14 + $0x98] sm:$0xff]
        %v1861 = vld [vmem:[#allocation14 + $0xa0] sm:$0xff]
        %v1862 = vld [vmem:[#allocation14 + $0xa8] sm:$0xff]
        %v1863 = vld [vmem:[#allocation14 + $0xb0] sm:$0xff]
        %v1864 = vld [vmem:[#allocation14 + $0xb8] sm:$0xff]
        %v1865 = vld [vmem:[#allocation14 + $0xc0] sm:$0xff]
        %v1866 = vld [vmem:[#allocation14 + $0xc8] sm:$0xff]
        %v1867 = vld [vmem:[#allocation14 + $0xd0] sm:$0xff]
        %v1868 = vld [vmem:[#allocation14 + $0xd8] sm:$0xff]
        %v1869 = vld [vmem:[#allocation14 + $0xe0] sm:$0xff]
        %v1870 = vld [vmem:[#allocation14 + $0xe8] sm:$0xff]
        %v1871 = vld [vmem:[#allocation14 + $0xf0] sm:$0xff]
        %v1872 = vld [vmem:[#allocation14 + $0xf8] sm:$0xff]
        %v1873 = vld [vmem:[%s13] sm:$0x1]
        %v1875 = vperm.slane %v1873, 0
        %1877 = vmatpush.msra.mxu0 %v1856
        %1878 = vmatpush.msra.mxu0 %v1855
        %1879 = vmatpush.msra.mxu0 %v1854
        %1880 = vmatpush.msra.mxu0 %v1853
        %1881 = vmatpush.msra.mxu0 %v1852
        %1882 = vmatpush.msra.mxu0 %v1851
        %1883 = vmatpush.msra.mxu0 %v1850
        %1884 = vmatpush.msra.mxu0 %v1849
        %1885 = vmatpush.msra.mxu0 %v1848
        %1886 = vmatpush.msra.mxu0 %v1847
        %1887 = vmatpush.msra.mxu0 %v1846
        %1888 = vmatpush.msra.mxu0 %v1845
        %1889 = vmatpush.msra.mxu0 %v1844
        %1890 = vmatpush.msra.mxu0 %v1843
        %1891 = vmatpush.msra.mxu0 %v1842
        %1892 = vmatpush.msra.mxu0 %v1841
        %1893 = vmatmul.f32.gmra.mxu0 %v1837
        %v1894 = vpop.f32.mrf.mxu0
        %v1895 = vadd.f32 %v1875, %v1894
        %1896 = vmatmul.f32.gmra.mxu0 %v1839
        %v1897 = vpop.f32.mrf.mxu0
        %v1898 = vadd.f32 %v1875, %v1897
        %1899 = vdwg.mxu0
        %1900 = vmatpush.msra.mxu0 %v1872
        %1901 = vmatpush.msra.mxu0 %v1871
        %1902 = vmatpush.msra.mxu0 %v1870
        %1903 = vmatpush.msra.mxu0 %v1869
        %1904 = vmatpush.msra.mxu0 %v1868
        %1905 = vmatpush.msra.mxu0 %v1867
        %1906 = vmatpush.msra.mxu0 %v1866
        %1907 = vmatpush.msra.mxu0 %v1865
        %1908 = vmatpush.msra.mxu0 %v1864
        %1909 = vmatpush.msra.mxu0 %v1863
        %1910 = vmatpush.msra.mxu0 %v1862
        %1911 = vmatpush.msra.mxu0 %v1861
        %1912 = vmatpush.msra.mxu0 %v1860
        %1913 = vmatpush.msra.mxu0 %v1859
        %1914 = vmatpush.msra.mxu0 %v1858
        %1915 = vmatpush.msra.mxu0 %v1857
        %1916 = vmatmul.f32.gmra.mxu0 %v1838
        %v1917 = vpop.f32.mrf.mxu0
        %v1918 = vadd.f32 %v1895, %v1917
        %1919 = vmatmul.f32.gmra.mxu0 %v1840
        %v1920 = vpop.f32.mrf.mxu0
        %v1921 = vadd.f32 %v1898, %v1920
        %1922 = vdwg.mxu0
        %v1923 = vadd.f32 %v1543, %v1918
        %v1924 = vadd.f32 %v1544, %v1921
        %1925 = vst [vmem:[%s671] sm:$0xff] %v1923
        %1926 = vst [vmem:[%s671 + $0x8] sm:$0xff] %v1924
        %s1927 = sand.u32 %s372, 1
        %s1928 = scalar_lea.sflag [#allocation4], %s1927
        %s1929 = sand.u32 %s372, 1
        %s1930 = smul.addr %s1929, 16
        %s1931 = scalar_lea.vmem [#allocation16], %s1930
        // Predicated region
        $region109: #{tpu_custom_call.1} parent=75 // pred_check
          %p1932 = pneg %p382
        $region110: #{tpu_custom_call.1} parent=75 // pred_check_branch
          %1934 = sbr.rel (%p1932) target = $region112
        $region111: #{tpu_custom_call.1} parent=75 // pred_region
          %s1935 = smul.u32 2, %s42
          %1937 = vsyncadd %s1928, 0
          %s1938 = smul.addr %s41, 2
          %s1939 = sadd.s32 %s1935, %s1938
          %s1940 = smul.addr %s1939, 8
          %s1941 = scalar_lea.hbm %s14, %s1940
          %s1942 = sshll.u32 %s1931, 4
          %s1943 = int_to_ptr.vmem [resolvable:$true] %s1942
          %s1944 = sshll.u32 %s1941, 4
          %s1945 = int_to_ptr.hbm [resolvable:$true] %s1944
          %1950 = dma.vmem_to_hbm [thread:$0]  %s1943, 256, %s1945, %s1928, 128, 128, 8
        $region112: #{tpu_custom_call.1} parent=75 // pred_fallthru
          _
      $region76: #{tpu_custom_call.1} parent=5 // pred_fallthru
        _
      %p1951 = scmp.le.s32.totalorder 2, %s32
      // Predicated region
      $region113: #{tpu_custom_call.1} parent=5 // pred_check
        %p1952 = pneg %p1951
      $region114: #{tpu_custom_call.1} parent=5 // pred_check_branch
        %1954 = sbr.rel (%p1952) target = $region116
      $region115: #{tpu_custom_call.1} parent=5 // pred_region
        %s1955 = ssub.s32 %s32, 2
        // Predicated region
        $region117: #{tpu_custom_call.1} parent=115 // pred_check
          %p1956 = pneg %p388
        $region118: #{tpu_custom_call.1} parent=115 // pred_check_branch
          %1958 = sbr.rel (%p1956) target = $region120
        $region119: #{tpu_custom_call.1} parent=115 // pred_region
          %s1959 = sand.u32 %s373, 1
          %s1960 = scalar_lea.sflag [#allocation4], %s1959
          %s1961 = sand.u32 %s373, 1
          %s1962 = smul.addr %s1961, 16
          %s1963 = scalar_lea.vmem [#allocation16], %s1962
          %1965 = dma.done %s1960, 256
        $region120: #{tpu_custom_call.1} parent=115 // pred_fallthru
          _
      $region116: #{tpu_custom_call.1} parent=5 // pred_fallthru
        _
    $region6: #{tpu_custom_call.1} parent=1 // loop_footer
      %s36 = sadd.s32 1, %s32
    $region7: #{tpu_custom_call.1} parent=1 // loop_footer_branch
      %31 = sbr.rel target = $region3
    $region8: #{tpu_custom_call.1} parent=1 // loop_exit
      _
    %1966 = vsyncpa [#allocation3], 1
    %s1967 = scalar_lea.sflag [#allocation3], 1
    %1968 = vsyncpa %s1967, 1
    %1969 = vsyncpa [#allocation6], 1
    %s1970 = scalar_lea.sflag [#allocation6], 1
    %1971 = vsyncpa %s1970, 1
    %1972 = vsyncpa [#allocation9], 1
    %1973 = vsyncpa [#allocation12], 1
    %1974 = vsyncpa [#allocation15], 1
    %1975 = vsyncpa [#allocation4], 1
    %s1976 = scalar_lea.sflag [#allocation4], 1
    %1977 = vsyncpa %s1976, 1

</llo_original>
